<compile_context>
chip_gen: v7x
topology: tpu7x:2x2x1
jax: 0.10.0
libtpu: 0.0.40
codegen_flags: <defaults>
</compile_context>

<pallas_src>
import functools
import math

import jax
import jax.numpy as jnp
from jax.experimental import pallas as pl
from jax.experimental.pallas import tpu as pltpu

HIDDEN = 32
NUM_HEADS = 8
LN_EPS = 1e-5


def _layer_norm(x, gamma, beta):
    mean = jnp.mean(x, axis=-1, keepdims=True)
    var = jnp.mean((x - mean) ** 2, axis=-1, keepdims=True)
    return (x - mean) * jax.lax.rsqrt(var + LN_EPS) * gamma + beta


def _gelu_exact(x):
    # PyTorch nn.GELU() default: 0.5 * x * (1 + erf(x / sqrt(2)))
    return 0.5 * x * (1.0 + jax.lax.erf(x * (1.0 / math.sqrt(2.0))))


def sab_kernel(x_ref, vec_ref, wqkv_ref, wo_ref, w1_ref, w2_ref, o_ref,
               *, tb, seq, hidden, num_heads):
    head_dim = hidden // num_heads
    rows = tb * seq

    # Flatten the (tb, seq, hidden) block to a single (rows, hidden) matrix so
    # every dense layer below is one matmul (major-dim reshape only: free).
    x = x_ref[...].reshape(rows, hidden).astype(jnp.float32)

    # Packed slab of small vectors: one (8, 4*hidden) tile, sliced by row.
    vec = vec_ref[...]
    g1, be1 = vec[0:1, :hidden], vec[1:2, :hidden]
    bqkv = vec[2:3, :3 * hidden]
    bo = vec[3:4, :hidden]
    g2, be2 = vec[4:5, :hidden], vec[5:6, :hidden]
    b1 = vec[6:7, :4 * hidden]
    b2 = vec[7:8, :hidden]

    # ---------------- attention branch ----------------
    normed = _layer_norm(x, g1, be1)

    # Fused QKV projection: one (rows, H) @ (H, 3H) matmul.
    qkv = jnp.dot(normed, wqkv_ref[...], preferred_element_type=jnp.float32) + bqkv
    q = qkv[:, 0:hidden]
    k = qkv[:, hidden:2 * hidden]
    v = qkv[:, 2 * hidden:3 * hidden]

    # Heads-outer batched view: (rows, hidden) -> (num_heads*tb, seq, head_dim).
    def split_heads(z):
        per_head = [
            z[:, h * head_dim:(h + 1) * head_dim].reshape(tb, seq, head_dim)
            for h in range(num_heads)
        ]
        return jnp.concatenate(per_head, axis=0)   # (num_heads*tb, seq, head_dim)

    qh = split_heads(q)
    kh = split_heads(k)
    vh = split_heads(v)

    # One batched score matmul over all (batch, head) pairs.
    scale = 1.0 / math.sqrt(head_dim)
    scores = jnp.einsum('bqd,bkd->bqk', qh, kh,
                        preferred_element_type=jnp.float32) * scale
    scores = scores - jnp.max(scores, axis=-1, keepdims=True)
    e = jnp.exp(scores)
    denom = jnp.sum(e, axis=-1, keepdims=True)
    attn = e * pl.reciprocal(denom, approx=False)   # attention dropout: identity (eval)
    ctx = jnp.einsum('bqk,bkd->bqd', attn, vh,
                     preferred_element_type=jnp.float32)  # (num_heads*tb, seq, head_dim)

    # Merge heads back to (rows, hidden).
    attn_out = jnp.concatenate(
        [ctx[h * tb:(h + 1) * tb].reshape(rows, head_dim) for h in range(num_heads)],
        axis=-1)

    attn_out = jnp.dot(attn_out, wo_ref[...], preferred_element_type=jnp.float32) + bo
    x1 = x + attn_out                                # residual 1 (dropout == identity)

    # ---------------- MLP branch ----------------
    normed2 = _layer_norm(x1, g2, be2)
    h1 = jnp.dot(normed2, w1_ref[...], preferred_element_type=jnp.float32) + b1
    h1 = _gelu_exact(h1)
    h2 = jnp.dot(h1, w2_ref[...], preferred_element_type=jnp.float32) + b2
    y = x1 + h2                                      # residual 2 (dropout == identity)

    o_ref[...] = y.reshape(o_ref.shape).astype(o_ref.dtype)


def _choose_batch_tile(batch, seq):
    # Target ~256 rows per grid step to amortize the ~0.35us/step overhead,
    # but keep >= 2 grid steps when the batch allows (v7x has 2 TensorCores).
    tb = max(1, 256 // max(seq, 1))
    tb = min(tb, batch)
    if batch >= 2:
        tb = min(tb, batch // 2)
    tb = max(tb, 1)
    while batch % tb:
        tb -= 1
    return tb


def _full_spec(shape):
    n = len(shape)
    return pl.BlockSpec(shape, lambda g, _n=n: (0,) * _n)


def self_attention_block(x, packed_params):
    vec, wqkv, wo, w1, w2 = packed_params
    B, S, H = x.shape
    tb = _choose_batch_tile(B, S)
    grid = (B // tb,)

    kernel = functools.partial(
        sab_kernel, tb=tb, seq=S, hidden=H, num_heads=NUM_HEADS)

    io_spec = pl.BlockSpec((tb, S, H), lambda g: (g, 0, 0))
    in_specs = [io_spec] + [_full_spec(p.shape) for p in (vec, wqkv, wo, w1, w2)]

    return pl.pallas_call(
        kernel,
        out_shape=jax.ShapeDtypeStruct((B, S, H), x.dtype),
        grid_spec=pltpu.PrefetchScalarGridSpec(
            num_scalar_prefetch=0,
            grid=grid,
            in_specs=in_specs,
            out_specs=io_spec,
        ),
        compiler_params=pltpu.CompilerParams(
            dimension_semantics=("parallel",)),
    )(x, vec, wqkv, wo, w1, w2)


# ---------- parameter construction / packing ----------
def make_params(key, hidden):
    ks = jax.random.split(key, 12)
    s = 0.1
    g1 = jnp.ones((1, hidden), jnp.float32)
    be1 = jnp.zeros((1, hidden), jnp.float32)
    qw = s * jax.random.normal(ks[0], (hidden, hidden), jnp.float32)
    qb = s * jax.random.normal(ks[1], (1, hidden), jnp.float32)
    kw = s * jax.random.normal(ks[2], (hidden, hidden), jnp.float32)
    kb = s * jax.random.normal(ks[3], (1, hidden), jnp.float32)
    vw = s * jax.random.normal(ks[4], (hidden, hidden), jnp.float32)
    vb = s * jax.random.normal(ks[5], (1, hidden), jnp.float32)
    ow = s * jax.random.normal(ks[6], (hidden, hidden), jnp.float32)
    ob = s * jax.random.normal(ks[7], (1, hidden), jnp.float32)
    g2 = jnp.ones((1, hidden), jnp.float32)
    be2 = jnp.zeros((1, hidden), jnp.float32)
    w1 = s * jax.random.normal(ks[8], (hidden, 4 * hidden), jnp.float32)
    b1 = s * jax.random.normal(ks[9], (1, 4 * hidden), jnp.float32)
    w2 = s * jax.random.normal(ks[10], (4 * hidden, hidden), jnp.float32)
    b2 = s * jax.random.normal(ks[11], (1, hidden), jnp.float32)
    return (g1, be1, qw, qb, kw, kb, vw, vb, ow, ob, g2, be2, w1, b1, w2, b2)


def pack_params(raw):
    (g1, be1, qw, qb, kw, kb, vw, vb, ow, ob, g2, be2, w1, b1, w2, b2) = raw
    hidden = qw.shape[0]
    width = 4 * hidden

    wqkv = jnp.concatenate([qw, kw, vw], axis=1).astype(jnp.float32)      # (H, 3H)
    bqkv = jnp.concatenate([qb.reshape(-1), kb.reshape(-1), vb.reshape(-1)])

    def row(v):
        v = jnp.asarray(v, jnp.float32).reshape(-1)
        return jnp.pad(v, (0, width - v.shape[0]))

    vec = jnp.stack([row(g1), row(be1), row(bqkv), row(ob),
                     row(g2), row(be2), row(b1), row(b2)], axis=0)        # (8, 4H)
    return (vec, wqkv,
            jnp.asarray(ow, jnp.float32),
            jnp.asarray(w1, jnp.float32),
            jnp.asarray(w2, jnp.float32))


# ---------- pure-JAX reference (correctness check only) ----------
def sab_reference(x, params):
    (g1, be1, qw, qb, kw, kb, vw, vb, ow, ob, g2, be2, w1, b1, w2, b2) = params
    B, S, H = x.shape
    nh = NUM_HEADS
    hd = H // nh

    def ln(z, g, bta):
        m = jnp.mean(z, axis=-1, keepdims=True)
        v = jnp.mean((z - m) ** 2, axis=-1, keepdims=True)
        return (z - m) * jax.lax.rsqrt(v + LN_EPS) * g + bta

    normed = ln(x, g1, be1)
    q = normed @ qw + qb
    k = normed @ kw + kb
    v = normed @ vw + vb

    def split(z):   # (B,S,H) -> (B, NH, S, D)
        return z.reshape(B, S, nh, hd).transpose(0, 2, 1, 3)

    qh, kh, vh = split(q), split(k), split(v)
    scores = jnp.einsum("bhsd,bhtd->bhst", qh, kh) / math.sqrt(hd)
    attn = jax.nn.softmax(scores, axis=-1)
    ao = jnp.einsum("bhst,bhtd->bhsd", attn, vh)
    ao = ao.transpose(0, 2, 1, 3).reshape(B, S, H)
    ao = ao @ ow + ob
    x1 = x + ao

    normed2 = ln(x1, g2, be2)
    h1 = normed2 @ w1 + b1
    h1 = 0.5 * h1 * (1.0 + jax.lax.erf(h1 / math.sqrt(2.0)))
    h2 = h1 @ w2 + b2
    return x1 + h2


if __name__ == "__main__":
    # TODO(synk): train-mode dropout (and the GPU flex_attention / NaN-guard paths)
    # are not implemented; this is the deterministic eval-mode forward.
    B, S, H = 2, 8, HIDDEN
    x = jax.random.normal(jax.random.PRNGKey(0), (B, S, H), jnp.float32)
    raw_params = make_params(jax.random.PRNGKey(42), H)
    packed = pack_params(raw_params)

    out = self_attention_block(x, packed)
    out = jax.block_until_ready(out)

    ref = sab_reference(x, raw_params)
    assert out.shape == (B, S, H)
    max_err = jnp.max(jnp.abs(out - ref))
    assert jnp.allclose(out, ref, atol=1e-4, rtol=1e-4), f"max abs err {max_err}"
    print("KERNEL_OK")
</pallas_src>

<mosaic_0001>
module attributes {stable_mosaic.version = 11 : i64} {
  func.func @sab_kernel(%arg0: i32, %arg1: memref<1x8x32xf32, #tpu.memory_space<vmem>>, %arg2: memref<8x128xf32, #tpu.memory_space<vmem>>, %arg3: memref<32x96xf32, #tpu.memory_space<vmem>>, %arg4: memref<32x32xf32, #tpu.memory_space<vmem>>, %arg5: memref<32x128xf32, #tpu.memory_space<vmem>>, %arg6: memref<128x32xf32, #tpu.memory_space<vmem>>, %arg7: memref<1x8x32xf32, #tpu.memory_space<vmem>>) attributes {dimension_semantics = [#tpu.dimension_semantics<parallel>], iteration_bounds = array<i64: 2>, scalar_prefetch = 0 : i64, scratch_operands = 0 : i64, tpu.core_type = #tpu.core_type<tc>, window_params = [{transform_indices = @transform_0, window_bounds = array<i64: 1, 8, 32>}, {pipeline_mode = #tpu.pipeline_mode<synchronous>, transform_indices = @transform_1, window_bounds = array<i64: 8, 128>}, {pipeline_mode = #tpu.pipeline_mode<synchronous>, transform_indices = @transform_2, window_bounds = array<i64: 32, 96>}, {pipeline_mode = #tpu.pipeline_mode<synchronous>, transform_indices = @transform_3, window_bounds = array<i64: 32, 32>}, {pipeline_mode = #tpu.pipeline_mode<synchronous>, transform_indices = @transform_4, window_bounds = array<i64: 32, 128>}, {pipeline_mode = #tpu.pipeline_mode<synchronous>, transform_indices = @transform_5, window_bounds = array<i64: 128, 32>}, {transform_indices = @transform_6, window_bounds = array<i64: 1, 8, 32>}]} {
    %c0 = arith.constant 0 : index
    %c0_0 = arith.constant 0 : index
    %c0_1 = arith.constant 0 : index
    %0 = vector.load %arg1[%c0, %c0_0, %c0_1] : memref<1x8x32xf32, #tpu.memory_space<vmem>>, vector<1x8x32xf32>
    %1 = vector.shape_cast %0 : vector<1x8x32xf32> to vector<8x32xf32>
    %c0_2 = arith.constant 0 : index
    %c0_3 = arith.constant 0 : index
    %2 = vector.load %arg2[%c0_2, %c0_3] : memref<8x128xf32, #tpu.memory_space<vmem>>, vector<8x128xf32>
    %3 = vector.extract_strided_slice %2 {offsets = [0, 0], sizes = [1, 32], strides = [1, 1]} : vector<8x128xf32> to vector<1x32xf32>
    %4 = vector.extract_strided_slice %2 {offsets = [1, 0], sizes = [1, 32], strides = [1, 1]} : vector<8x128xf32> to vector<1x32xf32>
    %5 = vector.extract_strided_slice %2 {offsets = [2, 0], sizes = [1, 96], strides = [1, 1]} : vector<8x128xf32> to vector<1x96xf32>
    %6 = vector.extract_strided_slice %2 {offsets = [3, 0], sizes = [1, 32], strides = [1, 1]} : vector<8x128xf32> to vector<1x32xf32>
    %7 = vector.extract_strided_slice %2 {offsets = [4, 0], sizes = [1, 32], strides = [1, 1]} : vector<8x128xf32> to vector<1x32xf32>
    %8 = vector.extract_strided_slice %2 {offsets = [5, 0], sizes = [1, 32], strides = [1, 1]} : vector<8x128xf32> to vector<1x32xf32>
    %9 = vector.extract_strided_slice %2 {offsets = [6, 0], sizes = [1, 128], strides = [1, 1]} : vector<8x128xf32> to vector<1x128xf32>
    %10 = vector.extract_strided_slice %2 {offsets = [7, 0], sizes = [1, 32], strides = [1, 1]} : vector<8x128xf32> to vector<1x32xf32>
    %cst = arith.constant dense<0.000000e+00> : vector<8xf32>
    %11 = vector.multi_reduction <add>, %1, %cst [1] : vector<8x32xf32> to vector<8xf32>
    %12 = vector.shape_cast %11 : vector<8xf32> to vector<8x1xf32>
    %cst_4 = arith.constant 3.200000e+01 : f32
    %13 = vector.broadcast %cst_4 : f32 to vector<8x1xf32>
    %14 = arith.divf %12, %13 : vector<8x1xf32>
    %15 = vector.broadcast %14 : vector<8x1xf32> to vector<8x32xf32>
    %16 = arith.subf %1, %15 : vector<8x32xf32>
    %17 = arith.mulf %16, %16 : vector<8x32xf32>
    %cst_5 = arith.constant dense<0.000000e+00> : vector<8xf32>
    %18 = vector.multi_reduction <add>, %17, %cst_5 [1] : vector<8x32xf32> to vector<8xf32>
    %19 = vector.shape_cast %18 : vector<8xf32> to vector<8x1xf32>
    %cst_6 = arith.constant 3.200000e+01 : f32
    %20 = vector.broadcast %cst_6 : f32 to vector<8x1xf32>
    %21 = arith.divf %19, %20 : vector<8x1xf32>
    %22 = vector.broadcast %14 : vector<8x1xf32> to vector<8x32xf32>
    %23 = arith.subf %1, %22 : vector<8x32xf32>
    %cst_7 = arith.constant 9.99999974E-6 : f32
    %24 = vector.broadcast %cst_7 : f32 to vector<8x1xf32>
    %25 = arith.addf %21, %24 : vector<8x1xf32>
    %26 = math.rsqrt %25 : vector<8x1xf32>
    %27 = vector.broadcast %26 : vector<8x1xf32> to vector<8x32xf32>
    %28 = arith.mulf %23, %27 : vector<8x32xf32>
    %29 = vector.broadcast %3 : vector<1x32xf32> to vector<8x32xf32>
    %30 = arith.mulf %28, %29 : vector<8x32xf32>
    %31 = vector.broadcast %4 : vector<1x32xf32> to vector<8x32xf32>
    %32 = arith.addf %30, %31 : vector<8x32xf32>
    %c0_8 = arith.constant 0 : index
    %c0_9 = arith.constant 0 : index
    %33 = vector.load %arg3[%c0_8, %c0_9] : memref<32x96xf32, #tpu.memory_space<vmem>>, vector<32x96xf32>
    %cst_10 = arith.constant dense<0.000000e+00> : vector<8x96xf32>
    %34 = tpu.matmul %32, %33, %cst_10 {dimension_numbers = #tpu.dot_dimension_numbers<[1], [0], [0], [1], [0, 0, 1, 1], [], []>} : vector<8x32xf32>, vector<32x96xf32>, vector<8x96xf32> -> vector<8x96xf32>
    %35 = vector.broadcast %5 : vector<1x96xf32> to vector<8x96xf32>
    %36 = arith.addf %34, %35 : vector<8x96xf32>
    %37 = vector.extract_strided_slice %36 {offsets = [0, 0], sizes = [8, 32], strides = [1, 1]} : vector<8x96xf32> to vector<8x32xf32>
    %38 = vector.extract_strided_slice %36 {offsets = [0, 32], sizes = [8, 32], strides = [1, 1]} : vector<8x96xf32> to vector<8x32xf32>
    %39 = vector.extract_strided_slice %36 {offsets = [0, 64], sizes = [8, 32], strides = [1, 1]} : vector<8x96xf32> to vector<8x32xf32>
    %40 = vector.extract_strided_slice %37 {offsets = [0, 0], sizes = [8, 4], strides = [1, 1]} : vector<8x32xf32> to vector<8x4xf32>
    %41 = vector.shape_cast %40 : vector<8x4xf32> to vector<1x8x4xf32>
    %42 = vector.extract_strided_slice %37 {offsets = [0, 4], sizes = [8, 4], strides = [1, 1]} : vector<8x32xf32> to vector<8x4xf32>
    %43 = vector.shape_cast %42 : vector<8x4xf32> to vector<1x8x4xf32>
    %44 = vector.extract_strided_slice %37 {offsets = [0, 8], sizes = [8, 4], strides = [1, 1]} : vector<8x32xf32> to vector<8x4xf32>
    %45 = vector.shape_cast %44 : vector<8x4xf32> to vector<1x8x4xf32>
    %46 = vector.extract_strided_slice %37 {offsets = [0, 12], sizes = [8, 4], strides = [1, 1]} : vector<8x32xf32> to vector<8x4xf32>
    %47 = vector.shape_cast %46 : vector<8x4xf32> to vector<1x8x4xf32>
    %48 = vector.extract_strided_slice %37 {offsets = [0, 16], sizes = [8, 4], strides = [1, 1]} : vector<8x32xf32> to vector<8x4xf32>
    %49 = vector.shape_cast %48 : vector<8x4xf32> to vector<1x8x4xf32>
    %50 = vector.extract_strided_slice %37 {offsets = [0, 20], sizes = [8, 4], strides = [1, 1]} : vector<8x32xf32> to vector<8x4xf32>
    %51 = vector.shape_cast %50 : vector<8x4xf32> to vector<1x8x4xf32>
    %52 = vector.extract_strided_slice %37 {offsets = [0, 24], sizes = [8, 4], strides = [1, 1]} : vector<8x32xf32> to vector<8x4xf32>
    %53 = vector.shape_cast %52 : vector<8x4xf32> to vector<1x8x4xf32>
    %54 = vector.extract_strided_slice %37 {offsets = [0, 28], sizes = [8, 4], strides = [1, 1]} : vector<8x32xf32> to vector<8x4xf32>
    %55 = vector.shape_cast %54 : vector<8x4xf32> to vector<1x8x4xf32>
    %56 = tpu.concatenate %41, %43, %45, %47, %49, %51, %53, %55 in 0 : vector<1x8x4xf32>, vector<1x8x4xf32>, vector<1x8x4xf32>, vector<1x8x4xf32>, vector<1x8x4xf32>, vector<1x8x4xf32>, vector<1x8x4xf32>, vector<1x8x4xf32> -> vector<8x8x4xf32>
    %57 = vector.extract_strided_slice %38 {offsets = [0, 0], sizes = [8, 4], strides = [1, 1]} : vector<8x32xf32> to vector<8x4xf32>
    %58 = vector.shape_cast %57 : vector<8x4xf32> to vector<1x8x4xf32>
    %59 = vector.extract_strided_slice %38 {offsets = [0, 4], sizes = [8, 4], strides = [1, 1]} : vector<8x32xf32> to vector<8x4xf32>
    %60 = vector.shape_cast %59 : vector<8x4xf32> to vector<1x8x4xf32>
    %61 = vector.extract_strided_slice %38 {offsets = [0, 8], sizes = [8, 4], strides = [1, 1]} : vector<8x32xf32> to vector<8x4xf32>
    %62 = vector.shape_cast %61 : vector<8x4xf32> to vector<1x8x4xf32>
    %63 = vector.extract_strided_slice %38 {offsets = [0, 12], sizes = [8, 4], strides = [1, 1]} : vector<8x32xf32> to vector<8x4xf32>
    %64 = vector.shape_cast %63 : vector<8x4xf32> to vector<1x8x4xf32>
    %65 = vector.extract_strided_slice %38 {offsets = [0, 16], sizes = [8, 4], strides = [1, 1]} : vector<8x32xf32> to vector<8x4xf32>
    %66 = vector.shape_cast %65 : vector<8x4xf32> to vector<1x8x4xf32>
    %67 = vector.extract_strided_slice %38 {offsets = [0, 20], sizes = [8, 4], strides = [1, 1]} : vector<8x32xf32> to vector<8x4xf32>
    %68 = vector.shape_cast %67 : vector<8x4xf32> to vector<1x8x4xf32>
    %69 = vector.extract_strided_slice %38 {offsets = [0, 24], sizes = [8, 4], strides = [1, 1]} : vector<8x32xf32> to vector<8x4xf32>
    %70 = vector.shape_cast %69 : vector<8x4xf32> to vector<1x8x4xf32>
    %71 = vector.extract_strided_slice %38 {offsets = [0, 28], sizes = [8, 4], strides = [1, 1]} : vector<8x32xf32> to vector<8x4xf32>
    %72 = vector.shape_cast %71 : vector<8x4xf32> to vector<1x8x4xf32>
    %73 = tpu.concatenate %58, %60, %62, %64, %66, %68, %70, %72 in 0 : vector<1x8x4xf32>, vector<1x8x4xf32>, vector<1x8x4xf32>, vector<1x8x4xf32>, vector<1x8x4xf32>, vector<1x8x4xf32>, vector<1x8x4xf32>, vector<1x8x4xf32> -> vector<8x8x4xf32>
    %74 = vector.extract_strided_slice %39 {offsets = [0, 0], sizes = [8, 4], strides = [1, 1]} : vector<8x32xf32> to vector<8x4xf32>
    %75 = vector.shape_cast %74 : vector<8x4xf32> to vector<1x8x4xf32>
    %76 = vector.extract_strided_slice %39 {offsets = [0, 4], sizes = [8, 4], strides = [1, 1]} : vector<8x32xf32> to vector<8x4xf32>
    %77 = vector.shape_cast %76 : vector<8x4xf32> to vector<1x8x4xf32>
    %78 = vector.extract_strided_slice %39 {offsets = [0, 8], sizes = [8, 4], strides = [1, 1]} : vector<8x32xf32> to vector<8x4xf32>
    %79 = vector.shape_cast %78 : vector<8x4xf32> to vector<1x8x4xf32>
    %80 = vector.extract_strided_slice %39 {offsets = [0, 12], sizes = [8, 4], strides = [1, 1]} : vector<8x32xf32> to vector<8x4xf32>
    %81 = vector.shape_cast %80 : vector<8x4xf32> to vector<1x8x4xf32>
    %82 = vector.extract_strided_slice %39 {offsets = [0, 16], sizes = [8, 4], strides = [1, 1]} : vector<8x32xf32> to vector<8x4xf32>
    %83 = vector.shape_cast %82 : vector<8x4xf32> to vector<1x8x4xf32>
    %84 = vector.extract_strided_slice %39 {offsets = [0, 20], sizes = [8, 4], strides = [1, 1]} : vector<8x32xf32> to vector<8x4xf32>
    %85 = vector.shape_cast %84 : vector<8x4xf32> to vector<1x8x4xf32>
    %86 = vector.extract_strided_slice %39 {offsets = [0, 24], sizes = [8, 4], strides = [1, 1]} : vector<8x32xf32> to vector<8x4xf32>
    %87 = vector.shape_cast %86 : vector<8x4xf32> to vector<1x8x4xf32>
    %88 = vector.extract_strided_slice %39 {offsets = [0, 28], sizes = [8, 4], strides = [1, 1]} : vector<8x32xf32> to vector<8x4xf32>
    %89 = vector.shape_cast %88 : vector<8x4xf32> to vector<1x8x4xf32>
    %90 = tpu.concatenate %75, %77, %79, %81, %83, %85, %87, %89 in 0 : vector<1x8x4xf32>, vector<1x8x4xf32>, vector<1x8x4xf32>, vector<1x8x4xf32>, vector<1x8x4xf32>, vector<1x8x4xf32>, vector<1x8x4xf32>, vector<1x8x4xf32> -> vector<8x8x4xf32>
    "tpu.trace_start"() <{level = 10 : i32, message = "bqd,bkd->bqk"}> : () -> ()
    %cst_11 = arith.constant dense<0.000000e+00> : vector<8x8x8xf32>
    %91 = tpu.matmul %56, %73, %cst_11 {dimension_numbers = #tpu.dot_dimension_numbers<[2], [2], [1], [1], [0, 0, 0, 1, 1, 1], [0], [0]>} : vector<8x8x4xf32>, vector<8x8x4xf32>, vector<8x8x8xf32> -> vector<8x8x8xf32>
    "tpu.trace_stop"() : () -> ()
    %cst_12 = arith.constant 5.000000e-01 : f32
    %92 = vector.broadcast %cst_12 : f32 to vector<8x8x8xf32>
    %93 = arith.mulf %91, %92 : vector<8x8x8xf32>
    %cst_13 = arith.constant dense<0xFF800000> : vector<8x8xf32>
    %94 = vector.multi_reduction <maximumf>, %93, %cst_13 [2] : vector<8x8x8xf32> to vector<8x8xf32>
    %95 = vector.shape_cast %94 : vector<8x8xf32> to vector<8x8x1xf32>
    %96 = vector.broadcast %95 : vector<8x8x1xf32> to vector<8x8x8xf32>
    %97 = arith.subf %93, %96 : vector<8x8x8xf32>
    %98 = math.exp %97 : vector<8x8x8xf32>
    %cst_14 = arith.constant dense<0.000000e+00> : vector<8x8xf32>
    %99 = vector.multi_reduction <add>, %98, %cst_14 [2] : vector<8x8x8xf32> to vector<8x8xf32>
    %100 = vector.shape_cast %99 : vector<8x8xf32> to vector<8x8x1xf32>
    %101 = tpu.reciprocal %100 : vector<8x8x1xf32> -> vector<8x8x1xf32>
    %102 = vector.broadcast %101 : vector<8x8x1xf32> to vector<8x8x8xf32>
    %103 = arith.mulf %98, %102 : vector<8x8x8xf32>
    "tpu.trace_start"() <{level = 10 : i32, message = "bqk,bkd->bqd"}> : () -> ()
    %cst_15 = arith.constant dense<0.000000e+00> : vector<8x8x4xf32>
    %104 = tpu.matmul %103, %90, %cst_15 {dimension_numbers = #tpu.dot_dimension_numbers<[2], [1], [1], [2], [0, 0, 0, 1, 1, 2], [0], [0]>} : vector<8x8x8xf32>, vector<8x8x4xf32>, vector<8x8x4xf32> -> vector<8x8x4xf32>
    "tpu.trace_stop"() : () -> ()
    %105 = vector.extract_strided_slice %104 {offsets = [0, 0, 0], sizes = [1, 8, 4], strides = [1, 1, 1]} : vector<8x8x4xf32> to vector<1x8x4xf32>
    %106 = vector.shape_cast %105 : vector<1x8x4xf32> to vector<8x4xf32>
    %107 = vector.extract_strided_slice %104 {offsets = [1, 0, 0], sizes = [1, 8, 4], strides = [1, 1, 1]} : vector<8x8x4xf32> to vector<1x8x4xf32>
    %108 = vector.shape_cast %107 : vector<1x8x4xf32> to vector<8x4xf32>
    %109 = vector.extract_strided_slice %104 {offsets = [2, 0, 0], sizes = [1, 8, 4], strides = [1, 1, 1]} : vector<8x8x4xf32> to vector<1x8x4xf32>
    %110 = vector.shape_cast %109 : vector<1x8x4xf32> to vector<8x4xf32>
    %111 = vector.extract_strided_slice %104 {offsets = [3, 0, 0], sizes = [1, 8, 4], strides = [1, 1, 1]} : vector<8x8x4xf32> to vector<1x8x4xf32>
    %112 = vector.shape_cast %111 : vector<1x8x4xf32> to vector<8x4xf32>
    %113 = vector.extract_strided_slice %104 {offsets = [4, 0, 0], sizes = [1, 8, 4], strides = [1, 1, 1]} : vector<8x8x4xf32> to vector<1x8x4xf32>
    %114 = vector.shape_cast %113 : vector<1x8x4xf32> to vector<8x4xf32>
    %115 = vector.extract_strided_slice %104 {offsets = [5, 0, 0], sizes = [1, 8, 4], strides = [1, 1, 1]} : vector<8x8x4xf32> to vector<1x8x4xf32>
    %116 = vector.shape_cast %115 : vector<1x8x4xf32> to vector<8x4xf32>
    %117 = vector.extract_strided_slice %104 {offsets = [6, 0, 0], sizes = [1, 8, 4], strides = [1, 1, 1]} : vector<8x8x4xf32> to vector<1x8x4xf32>
    %118 = vector.shape_cast %117 : vector<1x8x4xf32> to vector<8x4xf32>
    %119 = vector.extract_strided_slice %104 {offsets = [7, 0, 0], sizes = [1, 8, 4], strides = [1, 1, 1]} : vector<8x8x4xf32> to vector<1x8x4xf32>
    %120 = vector.shape_cast %119 : vector<1x8x4xf32> to vector<8x4xf32>
    %121 = tpu.concatenate %106, %108, %110, %112, %114, %116, %118, %120 in 1 : vector<8x4xf32>, vector<8x4xf32>, vector<8x4xf32>, vector<8x4xf32>, vector<8x4xf32>, vector<8x4xf32>, vector<8x4xf32>, vector<8x4xf32> -> vector<8x32xf32>
    %c0_16 = arith.constant 0 : index
    %c0_17 = arith.constant 0 : index
    %122 = vector.load %arg4[%c0_16, %c0_17] : memref<32x32xf32, #tpu.memory_space<vmem>>, vector<32x32xf32>
    %cst_18 = arith.constant dense<0.000000e+00> : vector<8x32xf32>
    %123 = tpu.matmul %121, %122, %cst_18 {dimension_numbers = #tpu.dot_dimension_numbers<[1], [0], [0], [1], [0, 0, 1, 1], [], []>} : vector<8x32xf32>, vector<32x32xf32>, vector<8x32xf32> -> vector<8x32xf32>
    %124 = vector.broadcast %6 : vector<1x32xf32> to vector<8x32xf32>
    %125 = arith.addf %123, %124 : vector<8x32xf32>
    %126 = arith.addf %1, %125 : vector<8x32xf32>
    %cst_19 = arith.constant dense<0.000000e+00> : vector<8xf32>
    %127 = vector.multi_reduction <add>, %126, %cst_19 [1] : vector<8x32xf32> to vector<8xf32>
    %128 = vector.shape_cast %127 : vector<8xf32> to vector<8x1xf32>
    %cst_20 = arith.constant 3.200000e+01 : f32
    %129 = vector.broadcast %cst_20 : f32 to vector<8x1xf32>
    %130 = arith.divf %128, %129 : vector<8x1xf32>
    %131 = vector.broadcast %130 : vector<8x1xf32> to vector<8x32xf32>
    %132 = arith.subf %126, %131 : vector<8x32xf32>
    %133 = arith.mulf %132, %132 : vector<8x32xf32>
    %cst_21 = arith.constant dense<0.000000e+00> : vector<8xf32>
    %134 = vector.multi_reduction <add>, %133, %cst_21 [1] : vector<8x32xf32> to vector<8xf32>
    %135 = vector.shape_cast %134 : vector<8xf32> to vector<8x1xf32>
    %cst_22 = arith.constant 3.200000e+01 : f32
    %136 = vector.broadcast %cst_22 : f32 to vector<8x1xf32>
    %137 = arith.divf %135, %136 : vector<8x1xf32>
    %138 = vector.broadcast %130 : vector<8x1xf32> to vector<8x32xf32>
    %139 = arith.subf %126, %138 : vector<8x32xf32>
    %cst_23 = arith.constant 9.99999974E-6 : f32
    %140 = vector.broadcast %cst_23 : f32 to vector<8x1xf32>
    %141 = arith.addf %137, %140 : vector<8x1xf32>
    %142 = math.rsqrt %141 : vector<8x1xf32>
    %143 = vector.broadcast %142 : vector<8x1xf32> to vector<8x32xf32>
    %144 = arith.mulf %139, %143 : vector<8x32xf32>
    %145 = vector.broadcast %7 : vector<1x32xf32> to vector<8x32xf32>
    %146 = arith.mulf %144, %145 : vector<8x32xf32>
    %147 = vector.broadcast %8 : vector<1x32xf32> to vector<8x32xf32>
    %148 = arith.addf %146, %147 : vector<8x32xf32>
    %c0_24 = arith.constant 0 : index
    %c0_25 = arith.constant 0 : index
    %149 = vector.load %arg5[%c0_24, %c0_25] : memref<32x128xf32, #tpu.memory_space<vmem>>, vector<32x128xf32>
    %cst_26 = arith.constant dense<0.000000e+00> : vector<8x128xf32>
    %150 = tpu.matmul %148, %149, %cst_26 {dimension_numbers = #tpu.dot_dimension_numbers<[1], [0], [0], [1], [0, 0, 1, 1], [], []>} : vector<8x32xf32>, vector<32x128xf32>, vector<8x128xf32> -> vector<8x128xf32>
    %151 = vector.broadcast %9 : vector<1x128xf32> to vector<8x128xf32>
    %152 = arith.addf %150, %151 : vector<8x128xf32>
    %cst_27 = arith.constant 5.000000e-01 : f32
    %153 = vector.broadcast %cst_27 : f32 to vector<8x128xf32>
    %154 = arith.mulf %153, %152 : vector<8x128xf32>
    %cst_28 = arith.constant 0.707106769 : f32
    %155 = vector.broadcast %cst_28 : f32 to vector<8x128xf32>
    %156 = arith.mulf %152, %155 : vector<8x128xf32>
    %157 = math.erf %156 : vector<8x128xf32>
    %cst_29 = arith.constant 1.000000e+00 : f32
    %158 = vector.broadcast %cst_29 : f32 to vector<8x128xf32>
    %159 = arith.addf %158, %157 : vector<8x128xf32>
    %160 = arith.mulf %154, %159 : vector<8x128xf32>
    %c0_30 = arith.constant 0 : index
    %c0_31 = arith.constant 0 : index
    %161 = vector.load %arg6[%c0_30, %c0_31] : memref<128x32xf32, #tpu.memory_space<vmem>>, vector<128x32xf32>
    %cst_32 = arith.constant dense<0.000000e+00> : vector<8x32xf32>
    %162 = tpu.matmul %160, %161, %cst_32 {dimension_numbers = #tpu.dot_dimension_numbers<[1], [0], [0], [1], [0, 0, 1, 1], [], []>} : vector<8x128xf32>, vector<128x32xf32>, vector<8x32xf32> -> vector<8x32xf32>
    %163 = vector.broadcast %10 : vector<1x32xf32> to vector<8x32xf32>
    %164 = arith.addf %162, %163 : vector<8x32xf32>
    %165 = arith.addf %126, %164 : vector<8x32xf32>
    %166 = vector.shape_cast %165 : vector<8x32xf32> to vector<1x8x32xf32>
    %c0_33 = arith.constant 0 : index
    %c0_34 = arith.constant 0 : index
    %c0_35 = arith.constant 0 : index
    %167 = vector.load %arg7[%c0_33, %c0_34, %c0_35] : memref<1x8x32xf32, #tpu.memory_space<vmem>>, vector<1x8x32xf32>
    tpu.vector_store %arg7[%c0_33, %c0_34, %c0_35], %166 {strides = array<i32>} : memref<1x8x32xf32, #tpu.memory_space<vmem>>, vector<1x8x32xf32>,
    return
  }
  func.func @transform_0(%arg0: i32) -> (i32, i32, i32) {
    %c0_i32 = arith.constant 0 : i32
    %c0_i32_0 = arith.constant 0 : i32
    %c0_i32_1 = arith.constant 0 : i32
    return %arg0, %c0_i32, %c0_i32_0 : i32, i32, i32
  }
  func.func @transform_1(%arg0: i32) -> (i32, i32) {
    %c0_i32 = arith.constant 0 : i32
    %c0_i32_0 = arith.constant 0 : i32
    %c0_i32_1 = arith.constant 0 : i32
    return %c0_i32, %c0_i32_0 : i32, i32
  }
  func.func @transform_2(%arg0: i32) -> (i32, i32) {
    %c0_i32 = arith.constant 0 : i32
    %c0_i32_0 = arith.constant 0 : i32
    %c0_i32_1 = arith.constant 0 : i32
    return %c0_i32, %c0_i32_0 : i32, i32
  }
  func.func @transform_3(%arg0: i32) -> (i32, i32) {
    %c0_i32 = arith.constant 0 : i32
    %c0_i32_0 = arith.constant 0 : i32
    %c0_i32_1 = arith.constant 0 : i32
    return %c0_i32, %c0_i32_0 : i32, i32
  }
  func.func @transform_4(%arg0: i32) -> (i32, i32) {
    %c0_i32 = arith.constant 0 : i32
    %c0_i32_0 = arith.constant 0 : i32
    %c0_i32_1 = arith.constant 0 : i32
    return %c0_i32, %c0_i32_0 : i32, i32
  }
  func.func @transform_5(%arg0: i32) -> (i32, i32) {
    %c0_i32 = arith.constant 0 : i32
    %c0_i32_0 = arith.constant 0 : i32
    %c0_i32_1 = arith.constant 0 : i32
    return %c0_i32, %c0_i32_0 : i32, i32
  }
  func.func @transform_6(%arg0: i32) -> (i32, i32, i32) {
    %c0_i32 = arith.constant 0 : i32
    %c0_i32_0 = arith.constant 0 : i32
    %c0_i32_1 = arith.constant 0 : i32
    return %arg0, %c0_i32, %c0_i32_0 : i32, i32, i32
  }
}

</mosaic_0001>

<llo_original>
// kernel: tpu_custom_call.1
$region0: #{tpu_custom_call.1}
  #allocation0 [shape = 'u32[]', space=smem, size = 0x4, offset = 0x4, fixed_abs, tag = 'smem constant byte address 0x4 - core index']
  #allocation1 [shape = 'u32[144,128]{1,0:T(1,128)}', space=vmem, size = 0x12000, scoped, tag = 'internal scratch']
  %s0 = inlined_call_operand.vmem [shape: f32[2,8,32], index: 0, kind: input, shape index: {}]
  %s1 = inlined_call_operand.vmem [shape: f32[8,128], index: 1, kind: input, shape index: {}]
  %s2 = inlined_call_operand.vmem [shape: f32[32,96], index: 2, kind: input, shape index: {}]
  %s3 = inlined_call_operand.vmem [shape: f32[32,32], index: 3, kind: input, shape index: {}]
  %s4 = inlined_call_operand.vmem [shape: f32[32,128], index: 4, kind: input, shape index: {}]
  %s5 = inlined_call_operand.vmem [shape: f32[128,32], index: 5, kind: input, shape index: {}]
  %s6 = inlined_call_operand.hbm [shape: f32[2,8,32], index: 6, kind: output, shape index: {}]
  %s7 = sld [smem:[#allocation0]]
  $region57: #{tpu_custom_call.1} parent=0
    _
  %s9 = ssub.s32 1, %s7
  %s10 = scalar_select 0, %s9, %s7
  $region1: #{tpu_custom_call.1} parent=0
    #allocation2 [shape = 'u8[8192]{0}', space=vmem, size = 0x2000, scoped, tag = 'output window, operand 0']
    #allocation3 [shape = 's32[2]{0}', space=sflag, size = 0x8, scoped, tag = 'scoped memory for tpu_custom_call.1']
    %11 = vsyncpa [#allocation3], 0
    %s12 = scalar_lea.sflag [#allocation3], 1
    %13 = vsyncpa %s12, 0
    loop: start=0, step=1, limit=4
    $region2: #{tpu_custom_call.1} parent=1 // loop_pre_header
      _
    $region3: #{tpu_custom_call.1} parent=1 // loop_header
      %s15 = sphi 0, %s19
      %p16 = scmp.ge.s32.totalorder %s15, 4
      %s25 = sphi 0, %s27
      %s28 = sphi 0, %s25
      %s29 = sphi 0, %s28
      %s45 = sphi 0, %s29
      %s49 = sphi 0, %s49
      %s51 = sphi 0, %s49
      %s52 = sphi 0, %s51
      %s66 = sphi 0, %s52
      %s70 = sphi 0, %s70
      %s72 = sphi 0, %s70
      %s73 = sphi 0, %s72
      %s87 = sphi 0, %s73
      %s91 = sphi 0, %s91
      %s93 = sphi 0, %s91
      %s94 = sphi 0, %s93
      %s108 = sphi 0, %s94
      %s112 = sphi 0, %s112
      %s114 = sphi 0, %s112
      %s115 = sphi 0, %s114
      %s129 = sphi 0, %s115
      %s133 = sphi 0, %s133
      %s135 = sphi 0, %s133
      %s136 = sphi 0, %s135
      %s150 = sphi 0, %s136
      %s156 = sphi 0, %s158
      %s159 = sphi 0, %s156
      %s160 = sphi 0, %s159
      %s176 = sphi 0, %s160
    $region4: #{tpu_custom_call.1} parent=1 // loop_header_branch
      %18 = sbr.rel (%p16) target = $region8
    $region5: #{tpu_custom_call.1} parent=1 // loop_body
      %s20 = ssub.s32 %s15, 1
      %s21 = ssub.s32 %s15, 2
      %s22 = sadd.s32 %s15, 1
      %s23 = ssub.s32 %s15, %s22
      %p24 = scmp.eq.s32.totalorder %s23, 0
      %s26 = sadd.s32 %s25, 1
      %s27 = scalar_select %p24, %s25, %s26
      %p30 = pneg %p24
      %p31 = scmp.eq.s32.totalorder %s15, 1
      %p32 = por %p30, %p31
      %p33 = scmp.ne.s32.totalorder %s25, %s28
      %p34 = scmp.eq.s32.totalorder %s15, 0
      %p35 = por %p33, %p34
      %p36 = scmp.ne.s32.totalorder %s25, %s28
      %p37 = scmp.eq.s32.totalorder %s20, 1
      %p38 = por %p36, %p37
      %p39 = scmp.ne.s32.totalorder %s28, %s29
      %p40 = scmp.eq.s32.totalorder %s20, 0
      %p41 = por %p39, %p40
      %p42 = scmp.ne.s32.totalorder %s28, %s29
      %p43 = scmp.eq.s32.totalorder %s21, 1
      %p44 = por %p42, %p43
      %p46 = scmp.ne.s32.totalorder %s29, %s45
      %p47 = scmp.eq.s32.totalorder %s21, 0
      %p48 = por %p46, %p47
      %s50 = sadd.s32 %s49, 1
      %p53 = scmp.eq.s32.totalorder %s15, 1
      %p54 = scmp.ne.s32.totalorder %s49, %s51
      %p55 = scmp.eq.s32.totalorder %s15, 0
      %p56 = por %p54, %p55
      %p57 = scmp.ne.s32.totalorder %s49, %s51
      %p58 = scmp.eq.s32.totalorder %s20, 1
      %p59 = por %p57, %p58
      %p60 = scmp.ne.s32.totalorder %s51, %s52
      %p61 = scmp.eq.s32.totalorder %s20, 0
      %p62 = por %p60, %p61
      %p63 = scmp.ne.s32.totalorder %s51, %s52
      %p64 = scmp.eq.s32.totalorder %s21, 1
      %p65 = por %p63, %p64
      %p67 = scmp.ne.s32.totalorder %s52, %s66
      %p68 = scmp.eq.s32.totalorder %s21, 0
      %p69 = por %p67, %p68
      %s71 = sadd.s32 %s70, 1
      %p74 = scmp.eq.s32.totalorder %s15, 1
      %p75 = scmp.ne.s32.totalorder %s70, %s72
      %p76 = scmp.eq.s32.totalorder %s15, 0
      %p77 = por %p75, %p76
      %p78 = scmp.ne.s32.totalorder %s70, %s72
      %p79 = scmp.eq.s32.totalorder %s20, 1
      %p80 = por %p78, %p79
      %p81 = scmp.ne.s32.totalorder %s72, %s73
      %p82 = scmp.eq.s32.totalorder %s20, 0
      %p83 = por %p81, %p82
      %p84 = scmp.ne.s32.totalorder %s72, %s73
      %p85 = scmp.eq.s32.totalorder %s21, 1
      %p86 = por %p84, %p85
      %p88 = scmp.ne.s32.totalorder %s73, %s87
      %p89 = scmp.eq.s32.totalorder %s21, 0
      %p90 = por %p88, %p89
      %s92 = sadd.s32 %s91, 1
      %p95 = scmp.eq.s32.totalorder %s15, 1
      %p96 = scmp.ne.s32.totalorder %s91, %s93
      %p97 = scmp.eq.s32.totalorder %s15, 0
      %p98 = por %p96, %p97
      %p99 = scmp.ne.s32.totalorder %s91, %s93
      %p100 = scmp.eq.s32.totalorder %s20, 1
      %p101 = por %p99, %p100
      %p102 = scmp.ne.s32.totalorder %s93, %s94
      %p103 = scmp.eq.s32.totalorder %s20, 0
      %p104 = por %p102, %p103
      %p105 = scmp.ne.s32.totalorder %s93, %s94
      %p106 = scmp.eq.s32.totalorder %s21, 1
      %p107 = por %p105, %p106
      %p109 = scmp.ne.s32.totalorder %s94, %s108
      %p110 = scmp.eq.s32.totalorder %s21, 0
      %p111 = por %p109, %p110
      %s113 = sadd.s32 %s112, 1
      %p116 = scmp.eq.s32.totalorder %s15, 1
      %p117 = scmp.ne.s32.totalorder %s112, %s114
      %p118 = scmp.eq.s32.totalorder %s15, 0
      %p119 = por %p117, %p118
      %p120 = scmp.ne.s32.totalorder %s112, %s114
      %p121 = scmp.eq.s32.totalorder %s20, 1
      %p122 = por %p120, %p121
      %p123 = scmp.ne.s32.totalorder %s114, %s115
      %p124 = scmp.eq.s32.totalorder %s20, 0
      %p125 = por %p123, %p124
      %p126 = scmp.ne.s32.totalorder %s114, %s115
      %p127 = scmp.eq.s32.totalorder %s21, 1
      %p128 = por %p126, %p127
      %p130 = scmp.ne.s32.totalorder %s115, %s129
      %p131 = scmp.eq.s32.totalorder %s21, 0
      %p132 = por %p130, %p131
      %s134 = sadd.s32 %s133, 1
      %p137 = scmp.eq.s32.totalorder %s15, 1
      %p138 = scmp.ne.s32.totalorder %s133, %s135
      %p139 = scmp.eq.s32.totalorder %s15, 0
      %p140 = por %p138, %p139
      %p141 = scmp.ne.s32.totalorder %s133, %s135
      %p142 = scmp.eq.s32.totalorder %s20, 1
      %p143 = por %p141, %p142
      %p144 = scmp.ne.s32.totalorder %s135, %s136
      %p145 = scmp.eq.s32.totalorder %s20, 0
      %p146 = por %p144, %p145
      %p147 = scmp.ne.s32.totalorder %s135, %s136
      %p148 = scmp.eq.s32.totalorder %s21, 1
      %p149 = por %p147, %p148
      %p151 = scmp.ne.s32.totalorder %s136, %s150
      %p152 = scmp.eq.s32.totalorder %s21, 0
      %p153 = por %p151, %p152
      %s154 = ssub.s32 %s15, %s22
      %p155 = scmp.eq.s32.totalorder %s154, 0
      %s157 = sadd.s32 %s156, 1
      %s158 = scalar_select %p155, %s156, %s157
      %p161 = pneg %p155
      %p162 = scmp.eq.s32.totalorder %s15, 1
      %p163 = por %p161, %p162
      %p164 = scmp.ne.s32.totalorder %s156, %s159
      %p165 = scmp.eq.s32.totalorder %s15, 0
      %p166 = por %p164, %p165
      %p167 = scmp.ne.s32.totalorder %s156, %s159
      %p168 = scmp.eq.s32.totalorder %s20, 1
      %p169 = por %p167, %p168
      %p170 = scmp.ne.s32.totalorder %s159, %s160
      %p171 = scmp.eq.s32.totalorder %s20, 0
      %p172 = por %p170, %p171
      %p173 = scmp.ne.s32.totalorder %s159, %s160
      %p174 = scmp.eq.s32.totalorder %s21, 1
      %p175 = por %p173, %p174
      %p177 = scmp.ne.s32.totalorder %s160, %s176
      %p178 = scmp.eq.s32.totalorder %s21, 0
      %p179 = por %p177, %p178
      %p180 = scmp.le.s32.totalorder 1, %s15
      %p181 = scmp.lt.s32.totalorder %s15, 3
      %p182 = pnand %p180, %p181
      %p183 = pneg %p182
      // Predicated region
      $region9: #{tpu_custom_call.1} parent=5 // pred_check
        _
      $region10: #{tpu_custom_call.1} parent=5 // pred_check_branch
        %185 = sbr.rel (%p182) target = $region12
      $region11: #{tpu_custom_call.1} parent=5 // pred_region
        %s186 = ssub.s32 %s15, 1
        // Predicated region
        $region13: #{tpu_custom_call.1} parent=11 // pred_check
          %p187 = pneg %p62
        $region14: #{tpu_custom_call.1} parent=11 // pred_check_branch
          %189 = sbr.rel (%p187) target = $region16
        $region15: #{tpu_custom_call.1} parent=11 // pred_region
          _
        $region16: #{tpu_custom_call.1} parent=11 // pred_fallthru
          _
        // Predicated region
        $region17: #{tpu_custom_call.1} parent=11 // pred_check
          %p190 = pneg %p83
        $region18: #{tpu_custom_call.1} parent=11 // pred_check_branch
          %192 = sbr.rel (%p190) target = $region20
        $region19: #{tpu_custom_call.1} parent=11 // pred_region
          _
        $region20: #{tpu_custom_call.1} parent=11 // pred_fallthru
          _
        // Predicated region
        $region21: #{tpu_custom_call.1} parent=11 // pred_check
          %p193 = pneg %p104
        $region22: #{tpu_custom_call.1} parent=11 // pred_check_branch
          %195 = sbr.rel (%p193) target = $region24
        $region23: #{tpu_custom_call.1} parent=11 // pred_region
          _
        $region24: #{tpu_custom_call.1} parent=11 // pred_fallthru
          _
        // Predicated region
        $region25: #{tpu_custom_call.1} parent=11 // pred_check
          %p196 = pneg %p125
        $region26: #{tpu_custom_call.1} parent=11 // pred_check_branch
          %198 = sbr.rel (%p196) target = $region28
        $region27: #{tpu_custom_call.1} parent=11 // pred_region
          _
        $region28: #{tpu_custom_call.1} parent=11 // pred_fallthru
          _
        // Predicated region
        $region29: #{tpu_custom_call.1} parent=11 // pred_check
          %p199 = pneg %p146
        $region30: #{tpu_custom_call.1} parent=11 // pred_check_branch
          %201 = sbr.rel (%p199) target = $region32
        $region31: #{tpu_custom_call.1} parent=11 // pred_region
          _
        $region32: #{tpu_custom_call.1} parent=11 // pred_fallthru
          _
      $region12: #{tpu_custom_call.1} parent=5 // pred_fallthru
        _
      %p202 = scmp.lt.s32.totalorder %s15, 2
      // Predicated region
      $region33: #{tpu_custom_call.1} parent=5 // pred_check
        %p203 = pneg %p202
      $region34: #{tpu_custom_call.1} parent=5 // pred_check_branch
        %205 = sbr.rel (%p203) target = $region36
      $region35: #{tpu_custom_call.1} parent=5 // pred_region
        // Predicated region
        $region37: #{tpu_custom_call.1} parent=35 // pred_check
          %p206 = pneg %p35
        $region38: #{tpu_custom_call.1} parent=35 // pred_check_branch
          %208 = sbr.rel (%p206) target = $region40
        $region39: #{tpu_custom_call.1} parent=35 // pred_region
          %p209 = scmp.lt.s32.totalorder %s15, 1
          %s210 = scalar_select %p209, %s15, 1
          %s211 = smul.addr %s210, 8
          %s212 = scalar_lea.vmem %s0, %s211
        $region40: #{tpu_custom_call.1} parent=35 // pred_fallthru
          _
      $region36: #{tpu_custom_call.1} parent=5 // pred_fallthru
        _
      %p213 = scmp.le.s32.totalorder 1, %s15
      %p214 = scmp.lt.s32.totalorder %s15, 3
      %p215 = pnand %p213, %p214
      %p216 = pneg %p215
      // Predicated region
      $region41: #{tpu_custom_call.1} parent=5 // pred_check
        _
      $region42: #{tpu_custom_call.1} parent=5 // pred_check_branch
        %218 = sbr.rel (%p215) target = $region44
      $region43: #{tpu_custom_call.1} parent=5 // pred_region
        %s219 = ssub.s32 %s15, 1
        %p220 = scmp.lt.s32.totalorder %s20, 1
        %s221 = scalar_select %p220, %s20, 1
        %s222 = smul.addr %s221, 8
        %s223 = scalar_lea.vmem %s0, %s222
        %p224 = pneg %p41
        %p225 = pneg %p38
        %p226 = pneg %p62
        %p227 = pneg %p59
        %p228 = pneg %p83
        %p229 = pneg %p80
        %p230 = pneg %p104
        %p231 = pneg %p101
        %p232 = pneg %p125
        %p233 = pneg %p122
        %p234 = pneg %p146
        %p235 = pneg %p143
        %p236 = pneg %p172
        %p237 = pneg %p169
        %s238 = sand.u32 %s159, 1
        %s239 = scalar_lea.sflag [#allocation3], %s238
        %s240 = sand.u32 %s159, 1
        %s241 = smul.addr %s240, 8
        %s242 = scalar_lea.vmem [#allocation2], %s241
        %p243 = scmp.lt.s32.totalorder %s20, 1
        %s244 = scalar_select %p243, %s20, 1
        %s245 = smul.addr %s244, 8
        %s246 = scalar_lea.vmem %s0, %s245
        %v247 = vld [vmem:[%s246] sm:$0xff]
        %v248 = vld [vmem:[%s1] sm:$0xff]
        %vm249 = vcmask 261120
        %v250 = vsel %vm249, %v247, 0.0
        %251 = vadd.xlane.f32.xlu0 %v250
        %v252 = vpop.xlane.xlu0 %251
        %v253 = vrcp.pop 32.0
        %v254 = vmul.f32 %v252, %v253
        %v255 = vsub.f32 %v247, %v254
        %v256 = vmul.f32 %v255, %v255
        %v257 = vsel %vm249, %v256, 0.0
        %258 = vadd.xlane.f32.xlu0 %v257
        %v259 = vpop.xlane.xlu0 %258
        %v260 = vmul.f32 %v259, %v253
        %v261 = vadd.f32 %v260, 1e-05
        %v262 = vrsqrt.pop %v261
        %v263 = vmul.f32 %v255, %v262
        %v264 = vlaneseq
        %v265 = vshrl.u32 %v264, 7
        %v266 = vsub.s32 0, %v265
        %v267 = vrot.slane %v248, %v266
        %v268 = vmul.f32 %v263, %v267
        %v269 = vlaneseq
        %v270 = vshrl.u32 %v269, 7
        %v271 = vsub.s32 1, %v270
        %v272 = vrot.slane %v248, %v271
        %v273 = vadd.f32 %v268, %v272
        %v274 = vld [vmem:[%s2] sm:$0xff]
        %v275 = vld [vmem:[%s2 + $0x8] sm:$0xff]
        %v276 = vld [vmem:[%s2 + $0x10] sm:$0xff]
        %v277 = vld [vmem:[%s2 + $0x18] sm:$0xff]
        %v278 = vlaneseq
        %v279 = vshrl.u32 %v278, 7
        %v280 = vsub.s32 2, %v279
        %v281 = vrot.slane %v248, %v280
        %v283 = vsel %vm249, %v273, 0
        %285 = vmatprep.subr.mxu0 0.0
        %286 = vmatpush1.msra.mxu0 %v274
        %287 = vmatprep.subr.mxu0 0.0
        %288 = vmatpush1.msra.mxu0 %v275
        %289 = vmatprep.subr.mxu0 0.0
        %290 = vmatpush1.msra.mxu0 %v276
        %291 = vmatprep.subr.mxu0 0.0
        %292 = vmatpush1.msra.mxu0 %v277
        %293 = vmatprep.subr.mxu0 0.0
        %294 = vmatpush1.msra.mxu0 0.0
        %295 = vmatprep.subr.mxu0 0.0
        %296 = vmatpush1.msra.mxu0 0.0
        %297 = vmatprep.subr.mxu0 0.0
        %298 = vmatpush1.msra.mxu0 0.0
        %299 = vmatprep.subr.mxu0 0.0
        %300 = vmatpush1.msra.mxu0 0.0
        %301 = vmatprep.subr.mxu0 0.0
        %302 = vmatpush1.msra.mxu0 0.0
        %303 = vmatprep.subr.mxu0 0.0
        %304 = vmatpush1.msra.mxu0 0.0
        %305 = vmatprep.subr.mxu0 0.0
        %306 = vmatpush1.msra.mxu0 0.0
        %307 = vmatprep.subr.mxu0 0.0
        %308 = vmatpush1.msra.mxu0 0.0
        %309 = vmatprep.subr.mxu0 0.0
        %310 = vmatpush1.msra.mxu0 0.0
        %311 = vmatprep.subr.mxu0 0.0
        %312 = vmatpush1.msra.mxu0 0.0
        %313 = vmatprep.subr.mxu0 0.0
        %314 = vmatpush1.msra.mxu0 0.0
        %315 = vmatprep.subr.mxu0 0.0
        %316 = vmatpush1.msra.mxu0 0.0
        %317 = vmatprep.subr.mxu0 0.0
        %318 = vmatpush1.msra.mxu0 0.0
        %319 = vmatprep.subr.mxu0 0.0
        %320 = vmatpush1.msra.mxu0 0.0
        %321 = vmatprep.subr.mxu0 0.0
        %322 = vmatpush1.msra.mxu0 0.0
        %323 = vmatprep.subr.mxu0 0.0
        %324 = vmatpush1.msra.mxu0 0.0
        %325 = vmatprep.subr.mxu0 0.0
        %326 = vmatpush1.msra.mxu0 0.0
        %327 = vmatprep.subr.mxu0 0.0
        %328 = vmatpush1.msra.mxu0 0.0
        %329 = vmatprep.subr.mxu0 0.0
        %330 = vmatpush1.msra.mxu0 0.0
        %331 = vmatprep.subr.mxu0 0.0
        %332 = vmatpush1.msra.mxu0 0.0
        %333 = vmatprep.subr.mxu0 0.0
        %334 = vmatpush1.msra.mxu0 0.0
        %335 = vmatprep.subr.mxu0 0.0
        %336 = vmatpush1.msra.mxu0 0.0
        %337 = vmatprep.subr.mxu0 0.0
        %338 = vmatpush1.msra.mxu0 0.0
        %339 = vmatprep.subr.mxu0 0.0
        %340 = vmatpush1.msra.mxu0 0.0
        %341 = vmatprep.subr.mxu0 0.0
        %342 = vmatpush1.msra.mxu0 0.0
        %343 = vmatprep.subr.mxu0 0.0
        %344 = vmatpush1.msra.mxu0 0.0
        %345 = vmatprep.subr.mxu0 0.0
        %346 = vmatpush1.msra.mxu0 0.0
        %347 = vmatprep.subr.mxu0 0.0
        %348 = vmatpush1.msra.mxu0 0.0
        %349 = vmatprep.mubr.f32.mxu0 0.0
        %350 = vmatmul.mubr.f32.gmra.mrb[0].mxu0 %v283
        %v351 = vpop.f32.mrb[0].mxu0
        %v352 = vadd.f32 %v281, %v351
        %v353 = vpop.f32.mrb[0].mxu0
        %354 = vdwg.mxu0
        %356 = vrot.lane.b32.xlu0 %v352, 124
        %v357 = vpop.permute.xlu0 %356
        %358 = vrot.lane.b32.xlu0 %v352, 120
        %v359 = vpop.permute.xlu0 %358
        %360 = vrot.lane.b32.xlu0 %v352, 116
        %v361 = vpop.permute.xlu0 %360
        %362 = vrot.lane.b32.xlu0 %v352, 112
        %v363 = vpop.permute.xlu0 %362
        %364 = vrot.lane.b32.xlu0 %v352, 108
        %v365 = vpop.permute.xlu0 %364
        %366 = vrot.lane.b32.xlu0 %v352, 104
        %v367 = vpop.permute.xlu0 %366
        %368 = vrot.lane.b32.xlu0 %v352, 100
        %v369 = vpop.permute.xlu0 %368
        %370 = vrot.lane.b32.xlu0 %v352, 96
        %v371 = vpop.permute.xlu0 %370
        %vm372 = vcmask 31744
        %v373 = vsel %vm372, %v352, 0
        %v375 = vsel %vm372, %v371, 0
        %377 = vmatprep.subr.mxu0 0.0
        %378 = vmatpush1.xpose.msra.mxu0 %v375
        %379 = vmatprep.subr.mxu0 0.0
        %380 = vmatpush1.xpose.msra.mxu0 0.0
        %381 = vmatprep.subr.mxu0 0.0
        %382 = vmatpush1.xpose.msra.mxu0 0.0
        %383 = vmatprep.subr.mxu0 0.0
        %384 = vmatpush1.xpose.msra.mxu0 0.0
        %385 = vmatprep.subr.mxu0 0.0
        %386 = vmatpush1.xpose.msra.mxu0 0.0
        %387 = vmatprep.subr.mxu0 0.0
        %388 = vmatpush1.xpose.msra.mxu0 0.0
        %389 = vmatprep.subr.mxu0 0.0
        %390 = vmatpush1.xpose.msra.mxu0 0.0
        %391 = vmatprep.subr.mxu0 0.0
        %392 = vmatpush1.xpose.msra.mxu0 0.0
        %393 = vmatprep.subr.mxu0 0.0
        %394 = vmatpush1.xpose.msra.mxu0 0.0
        %395 = vmatprep.subr.mxu0 0.0
        %396 = vmatpush1.xpose.msra.mxu0 0.0
        %397 = vmatprep.subr.mxu0 0.0
        %398 = vmatpush1.xpose.msra.mxu0 0.0
        %399 = vmatprep.subr.mxu0 0.0
        %400 = vmatpush1.xpose.msra.mxu0 0.0
        %401 = vmatprep.subr.mxu0 0.0
        %402 = vmatpush1.xpose.msra.mxu0 0.0
        %403 = vmatprep.subr.mxu0 0.0
        %404 = vmatpush1.xpose.msra.mxu0 0.0
        %405 = vmatprep.subr.mxu0 0.0
        %406 = vmatpush1.xpose.msra.mxu0 0.0
        %407 = vmatprep.subr.mxu0 0.0
        %408 = vmatpush1.xpose.msra.mxu0 0.0
        %409 = vmatprep.subr.mxu0 0.0
        %410 = vmatpush1.xpose.msra.mxu0 0.0
        %411 = vmatprep.subr.mxu0 0.0
        %412 = vmatpush1.xpose.msra.mxu0 0.0
        %413 = vmatprep.subr.mxu0 0.0
        %414 = vmatpush1.xpose.msra.mxu0 0.0
        %415 = vmatprep.subr.mxu0 0.0
        %416 = vmatpush1.xpose.msra.mxu0 0.0
        %417 = vmatprep.subr.mxu0 0.0
        %418 = vmatpush1.xpose.msra.mxu0 0.0
        %419 = vmatprep.subr.mxu0 0.0
        %420 = vmatpush1.xpose.msra.mxu0 0.0
        %421 = vmatprep.subr.mxu0 0.0
        %422 = vmatpush1.xpose.msra.mxu0 0.0
        %423 = vmatprep.subr.mxu0 0.0
        %424 = vmatpush1.xpose.msra.mxu0 0.0
        %425 = vmatprep.subr.mxu0 0.0
        %426 = vmatpush1.xpose.msra.mxu0 0.0
        %427 = vmatprep.subr.mxu0 0.0
        %428 = vmatpush1.xpose.msra.mxu0 0.0
        %429 = vmatprep.subr.mxu0 0.0
        %430 = vmatpush1.xpose.msra.mxu0 0.0
        %431 = vmatprep.subr.mxu0 0.0
        %432 = vmatpush1.xpose.msra.mxu0 0.0
        %433 = vmatprep.subr.mxu0 0.0
        %434 = vmatpush1.xpose.msra.mxu0 0.0
        %435 = vmatprep.subr.mxu0 0.0
        %436 = vmatpush1.xpose.msra.mxu0 0.0
        %437 = vmatprep.subr.mxu0 0.0
        %438 = vmatpush1.xpose.msra.mxu0 0.0
        %439 = vmatprep.subr.mxu0 0.0
        %440 = vmatpush1.xpose.msra.mxu0 0.0
        %441 = vmatprep.mubr.f32.mxu0 0.0
        %442 = vmatmul.mubr.f32.gmra.mrb[0].mxu0 %v373
        %v443 = vpop.f32.mrb[0].mxu0
        %v444 = vadd.f32 0.0, %v443
        %v445 = vpop.f32.mrb[0].mxu0
        %446 = vdwg.mxu0
        %447 = vrot.lane.b32.xlu0 %v357, 96
        %v448 = vpop.permute.xlu0 %447
        %v449 = vsel %vm372, %v357, 0
        %v451 = vsel %vm372, %v448, 0
        %453 = vmatprep.subr.mxu0 0.0
        %454 = vmatpush1.xpose.msra.mxu0 %v451
        %455 = vmatprep.subr.mxu0 0.0
        %456 = vmatpush1.xpose.msra.mxu0 0.0
        %457 = vmatprep.subr.mxu0 0.0
        %458 = vmatpush1.xpose.msra.mxu0 0.0
        %459 = vmatprep.subr.mxu0 0.0
        %460 = vmatpush1.xpose.msra.mxu0 0.0
        %461 = vmatprep.subr.mxu0 0.0
        %462 = vmatpush1.xpose.msra.mxu0 0.0
        %463 = vmatprep.subr.mxu0 0.0
        %464 = vmatpush1.xpose.msra.mxu0 0.0
        %465 = vmatprep.subr.mxu0 0.0
        %466 = vmatpush1.xpose.msra.mxu0 0.0
        %467 = vmatprep.subr.mxu0 0.0
        %468 = vmatpush1.xpose.msra.mxu0 0.0
        %469 = vmatprep.subr.mxu0 0.0
        %470 = vmatpush1.xpose.msra.mxu0 0.0
        %471 = vmatprep.subr.mxu0 0.0
        %472 = vmatpush1.xpose.msra.mxu0 0.0
        %473 = vmatprep.subr.mxu0 0.0
        %474 = vmatpush1.xpose.msra.mxu0 0.0
        %475 = vmatprep.subr.mxu0 0.0
        %476 = vmatpush1.xpose.msra.mxu0 0.0
        %477 = vmatprep.subr.mxu0 0.0
        %478 = vmatpush1.xpose.msra.mxu0 0.0
        %479 = vmatprep.subr.mxu0 0.0
        %480 = vmatpush1.xpose.msra.mxu0 0.0
        %481 = vmatprep.subr.mxu0 0.0
        %482 = vmatpush1.xpose.msra.mxu0 0.0
        %483 = vmatprep.subr.mxu0 0.0
        %484 = vmatpush1.xpose.msra.mxu0 0.0
        %485 = vmatprep.subr.mxu0 0.0
        %486 = vmatpush1.xpose.msra.mxu0 0.0
        %487 = vmatprep.subr.mxu0 0.0
        %488 = vmatpush1.xpose.msra.mxu0 0.0
        %489 = vmatprep.subr.mxu0 0.0
        %490 = vmatpush1.xpose.msra.mxu0 0.0
        %491 = vmatprep.subr.mxu0 0.0
        %492 = vmatpush1.xpose.msra.mxu0 0.0
        %493 = vmatprep.subr.mxu0 0.0
        %494 = vmatpush1.xpose.msra.mxu0 0.0
        %495 = vmatprep.subr.mxu0 0.0
        %496 = vmatpush1.xpose.msra.mxu0 0.0
        %497 = vmatprep.subr.mxu0 0.0
        %498 = vmatpush1.xpose.msra.mxu0 0.0
        %499 = vmatprep.subr.mxu0 0.0
        %500 = vmatpush1.xpose.msra.mxu0 0.0
        %501 = vmatprep.subr.mxu0 0.0
        %502 = vmatpush1.xpose.msra.mxu0 0.0
        %503 = vmatprep.subr.mxu0 0.0
        %504 = vmatpush1.xpose.msra.mxu0 0.0
        %505 = vmatprep.subr.mxu0 0.0
        %506 = vmatpush1.xpose.msra.mxu0 0.0
        %507 = vmatprep.subr.mxu0 0.0
        %508 = vmatpush1.xpose.msra.mxu0 0.0
        %509 = vmatprep.subr.mxu0 0.0
        %510 = vmatpush1.xpose.msra.mxu0 0.0
        %511 = vmatprep.subr.mxu0 0.0
        %512 = vmatpush1.xpose.msra.mxu0 0.0
        %513 = vmatprep.subr.mxu0 0.0
        %514 = vmatpush1.xpose.msra.mxu0 0.0
        %515 = vmatprep.subr.mxu0 0.0
        %516 = vmatpush1.xpose.msra.mxu0 0.0
        %517 = vmatprep.mubr.f32.mxu0 0.0
        %518 = vmatmul.mubr.f32.gmra.mrb[0].mxu0 %v449
        %v519 = vpop.f32.mrb[0].mxu0
        %v520 = vadd.f32 0.0, %v519
        %v521 = vpop.f32.mrb[0].mxu0
        %522 = vdwg.mxu0
        %523 = vrot.lane.b32.xlu0 %v359, 96
        %v524 = vpop.permute.xlu0 %523
        %v525 = vsel %vm372, %v359, 0
        %v527 = vsel %vm372, %v524, 0
        %529 = vmatprep.subr.mxu0 0.0
        %530 = vmatpush1.xpose.msra.mxu0 %v527
        %531 = vmatprep.subr.mxu0 0.0
        %532 = vmatpush1.xpose.msra.mxu0 0.0
        %533 = vmatprep.subr.mxu0 0.0
        %534 = vmatpush1.xpose.msra.mxu0 0.0
        %535 = vmatprep.subr.mxu0 0.0
        %536 = vmatpush1.xpose.msra.mxu0 0.0
        %537 = vmatprep.subr.mxu0 0.0
        %538 = vmatpush1.xpose.msra.mxu0 0.0
        %539 = vmatprep.subr.mxu0 0.0
        %540 = vmatpush1.xpose.msra.mxu0 0.0
        %541 = vmatprep.subr.mxu0 0.0
        %542 = vmatpush1.xpose.msra.mxu0 0.0
        %543 = vmatprep.subr.mxu0 0.0
        %544 = vmatpush1.xpose.msra.mxu0 0.0
        %545 = vmatprep.subr.mxu0 0.0
        %546 = vmatpush1.xpose.msra.mxu0 0.0
        %547 = vmatprep.subr.mxu0 0.0
        %548 = vmatpush1.xpose.msra.mxu0 0.0
        %549 = vmatprep.subr.mxu0 0.0
        %550 = vmatpush1.xpose.msra.mxu0 0.0
        %551 = vmatprep.subr.mxu0 0.0
        %552 = vmatpush1.xpose.msra.mxu0 0.0
        %553 = vmatprep.subr.mxu0 0.0
        %554 = vmatpush1.xpose.msra.mxu0 0.0
        %555 = vmatprep.subr.mxu0 0.0
        %556 = vmatpush1.xpose.msra.mxu0 0.0
        %557 = vmatprep.subr.mxu0 0.0
        %558 = vmatpush1.xpose.msra.mxu0 0.0
        %559 = vmatprep.subr.mxu0 0.0
        %560 = vmatpush1.xpose.msra.mxu0 0.0
        %561 = vmatprep.subr.mxu0 0.0
        %562 = vmatpush1.xpose.msra.mxu0 0.0
        %563 = vmatprep.subr.mxu0 0.0
        %564 = vmatpush1.xpose.msra.mxu0 0.0
        %565 = vmatprep.subr.mxu0 0.0
        %566 = vmatpush1.xpose.msra.mxu0 0.0
        %567 = vmatprep.subr.mxu0 0.0
        %568 = vmatpush1.xpose.msra.mxu0 0.0
        %569 = vmatprep.subr.mxu0 0.0
        %570 = vmatpush1.xpose.msra.mxu0 0.0
        %571 = vmatprep.subr.mxu0 0.0
        %572 = vmatpush1.xpose.msra.mxu0 0.0
        %573 = vmatprep.subr.mxu0 0.0
        %574 = vmatpush1.xpose.msra.mxu0 0.0
        %575 = vmatprep.subr.mxu0 0.0
        %576 = vmatpush1.xpose.msra.mxu0 0.0
        %577 = vmatprep.subr.mxu0 0.0
        %578 = vmatpush1.xpose.msra.mxu0 0.0
        %579 = vmatprep.subr.mxu0 0.0
        %580 = vmatpush1.xpose.msra.mxu0 0.0
        %581 = vmatprep.subr.mxu0 0.0
        %582 = vmatpush1.xpose.msra.mxu0 0.0
        %583 = vmatprep.subr.mxu0 0.0
        %584 = vmatpush1.xpose.msra.mxu0 0.0
        %585 = vmatprep.subr.mxu0 0.0
        %586 = vmatpush1.xpose.msra.mxu0 0.0
        %587 = vmatprep.subr.mxu0 0.0
        %588 = vmatpush1.xpose.msra.mxu0 0.0
        %589 = vmatprep.subr.mxu0 0.0
        %590 = vmatpush1.xpose.msra.mxu0 0.0
        %591 = vmatprep.subr.mxu0 0.0
        %592 = vmatpush1.xpose.msra.mxu0 0.0
        %593 = vmatprep.mubr.f32.mxu0 0.0
        %594 = vmatmul.mubr.f32.gmra.mrb[0].mxu0 %v525
        %v595 = vpop.f32.mrb[0].mxu0
        %v596 = vadd.f32 0.0, %v595
        %v597 = vpop.f32.mrb[0].mxu0
        %598 = vdwg.mxu0
        %599 = vrot.lane.b32.xlu0 %v361, 96
        %v600 = vpop.permute.xlu0 %599
        %v601 = vsel %vm372, %v361, 0
        %v603 = vsel %vm372, %v600, 0
        %605 = vmatprep.subr.mxu0 0.0
        %606 = vmatpush1.xpose.msra.mxu0 %v603
        %607 = vmatprep.subr.mxu0 0.0
        %608 = vmatpush1.xpose.msra.mxu0 0.0
        %609 = vmatprep.subr.mxu0 0.0
        %610 = vmatpush1.xpose.msra.mxu0 0.0
        %611 = vmatprep.subr.mxu0 0.0
        %612 = vmatpush1.xpose.msra.mxu0 0.0
        %613 = vmatprep.subr.mxu0 0.0
        %614 = vmatpush1.xpose.msra.mxu0 0.0
        %615 = vmatprep.subr.mxu0 0.0
        %616 = vmatpush1.xpose.msra.mxu0 0.0
        %617 = vmatprep.subr.mxu0 0.0
        %618 = vmatpush1.xpose.msra.mxu0 0.0
        %619 = vmatprep.subr.mxu0 0.0
        %620 = vmatpush1.xpose.msra.mxu0 0.0
        %621 = vmatprep.subr.mxu0 0.0
        %622 = vmatpush1.xpose.msra.mxu0 0.0
        %623 = vmatprep.subr.mxu0 0.0
        %624 = vmatpush1.xpose.msra.mxu0 0.0
        %625 = vmatprep.subr.mxu0 0.0
        %626 = vmatpush1.xpose.msra.mxu0 0.0
        %627 = vmatprep.subr.mxu0 0.0
        %628 = vmatpush1.xpose.msra.mxu0 0.0
        %629 = vmatprep.subr.mxu0 0.0
        %630 = vmatpush1.xpose.msra.mxu0 0.0
        %631 = vmatprep.subr.mxu0 0.0
        %632 = vmatpush1.xpose.msra.mxu0 0.0
        %633 = vmatprep.subr.mxu0 0.0
        %634 = vmatpush1.xpose.msra.mxu0 0.0
        %635 = vmatprep.subr.mxu0 0.0
        %636 = vmatpush1.xpose.msra.mxu0 0.0
        %637 = vmatprep.subr.mxu0 0.0
        %638 = vmatpush1.xpose.msra.mxu0 0.0
        %639 = vmatprep.subr.mxu0 0.0
        %640 = vmatpush1.xpose.msra.mxu0 0.0
        %641 = vmatprep.subr.mxu0 0.0
        %642 = vmatpush1.xpose.msra.mxu0 0.0
        %643 = vmatprep.subr.mxu0 0.0
        %644 = vmatpush1.xpose.msra.mxu0 0.0
        %645 = vmatprep.subr.mxu0 0.0
        %646 = vmatpush1.xpose.msra.mxu0 0.0
        %647 = vmatprep.subr.mxu0 0.0
        %648 = vmatpush1.xpose.msra.mxu0 0.0
        %649 = vmatprep.subr.mxu0 0.0
        %650 = vmatpush1.xpose.msra.mxu0 0.0
        %651 = vmatprep.subr.mxu0 0.0
        %652 = vmatpush1.xpose.msra.mxu0 0.0
        %653 = vmatprep.subr.mxu0 0.0
        %654 = vmatpush1.xpose.msra.mxu0 0.0
        %655 = vmatprep.subr.mxu0 0.0
        %656 = vmatpush1.xpose.msra.mxu0 0.0
        %657 = vmatprep.subr.mxu0 0.0
        %658 = vmatpush1.xpose.msra.mxu0 0.0
        %659 = vmatprep.subr.mxu0 0.0
        %660 = vmatpush1.xpose.msra.mxu0 0.0
        %661 = vmatprep.subr.mxu0 0.0
        %662 = vmatpush1.xpose.msra.mxu0 0.0
        %663 = vmatprep.subr.mxu0 0.0
        %664 = vmatpush1.xpose.msra.mxu0 0.0
        %665 = vmatprep.subr.mxu0 0.0
        %666 = vmatpush1.xpose.msra.mxu0 0.0
        %667 = vmatprep.subr.mxu0 0.0
        %668 = vmatpush1.xpose.msra.mxu0 0.0
        %669 = vmatprep.mubr.f32.mxu0 0.0
        %670 = vmatmul.mubr.f32.gmra.mrb[0].mxu0 %v601
        %v671 = vpop.f32.mrb[0].mxu0
        %v672 = vadd.f32 0.0, %v671
        %v673 = vpop.f32.mrb[0].mxu0
        %674 = vdwg.mxu0
        %675 = vrot.lane.b32.xlu0 %v363, 96
        %v676 = vpop.permute.xlu0 %675
        %v677 = vsel %vm372, %v363, 0
        %v679 = vsel %vm372, %v676, 0
        %681 = vmatprep.subr.mxu0 0.0
        %682 = vmatpush1.xpose.msra.mxu0 %v679
        %683 = vmatprep.subr.mxu0 0.0
        %684 = vmatpush1.xpose.msra.mxu0 0.0
        %685 = vmatprep.subr.mxu0 0.0
        %686 = vmatpush1.xpose.msra.mxu0 0.0
        %687 = vmatprep.subr.mxu0 0.0
        %688 = vmatpush1.xpose.msra.mxu0 0.0
        %689 = vmatprep.subr.mxu0 0.0
        %690 = vmatpush1.xpose.msra.mxu0 0.0
        %691 = vmatprep.subr.mxu0 0.0
        %692 = vmatpush1.xpose.msra.mxu0 0.0
        %693 = vmatprep.subr.mxu0 0.0
        %694 = vmatpush1.xpose.msra.mxu0 0.0
        %695 = vmatprep.subr.mxu0 0.0
        %696 = vmatpush1.xpose.msra.mxu0 0.0
        %697 = vmatprep.subr.mxu0 0.0
        %698 = vmatpush1.xpose.msra.mxu0 0.0
        %699 = vmatprep.subr.mxu0 0.0
        %700 = vmatpush1.xpose.msra.mxu0 0.0
        %701 = vmatprep.subr.mxu0 0.0
        %702 = vmatpush1.xpose.msra.mxu0 0.0
        %703 = vmatprep.subr.mxu0 0.0
        %704 = vmatpush1.xpose.msra.mxu0 0.0
        %705 = vmatprep.subr.mxu0 0.0
        %706 = vmatpush1.xpose.msra.mxu0 0.0
        %707 = vmatprep.subr.mxu0 0.0
        %708 = vmatpush1.xpose.msra.mxu0 0.0
        %709 = vmatprep.subr.mxu0 0.0
        %710 = vmatpush1.xpose.msra.mxu0 0.0
        %711 = vmatprep.subr.mxu0 0.0
        %712 = vmatpush1.xpose.msra.mxu0 0.0
        %713 = vmatprep.subr.mxu0 0.0
        %714 = vmatpush1.xpose.msra.mxu0 0.0
        %715 = vmatprep.subr.mxu0 0.0
        %716 = vmatpush1.xpose.msra.mxu0 0.0
        %717 = vmatprep.subr.mxu0 0.0
        %718 = vmatpush1.xpose.msra.mxu0 0.0
        %719 = vmatprep.subr.mxu0 0.0
        %720 = vmatpush1.xpose.msra.mxu0 0.0
        %721 = vmatprep.subr.mxu0 0.0
        %722 = vmatpush1.xpose.msra.mxu0 0.0
        %723 = vmatprep.subr.mxu0 0.0
        %724 = vmatpush1.xpose.msra.mxu0 0.0
        %725 = vmatprep.subr.mxu0 0.0
        %726 = vmatpush1.xpose.msra.mxu0 0.0
        %727 = vmatprep.subr.mxu0 0.0
        %728 = vmatpush1.xpose.msra.mxu0 0.0
        %729 = vmatprep.subr.mxu0 0.0
        %730 = vmatpush1.xpose.msra.mxu0 0.0
        %731 = vmatprep.subr.mxu0 0.0
        %732 = vmatpush1.xpose.msra.mxu0 0.0
        %733 = vmatprep.subr.mxu0 0.0
        %734 = vmatpush1.xpose.msra.mxu0 0.0
        %735 = vmatprep.subr.mxu0 0.0
        %736 = vmatpush1.xpose.msra.mxu0 0.0
        %737 = vmatprep.subr.mxu0 0.0
        %738 = vmatpush1.xpose.msra.mxu0 0.0
        %739 = vmatprep.subr.mxu0 0.0
        %740 = vmatpush1.xpose.msra.mxu0 0.0
        %741 = vmatprep.subr.mxu0 0.0
        %742 = vmatpush1.xpose.msra.mxu0 0.0
        %743 = vmatprep.subr.mxu0 0.0
        %744 = vmatpush1.xpose.msra.mxu0 0.0
        %745 = vmatprep.mubr.f32.mxu0 0.0
        %746 = vmatmul.mubr.f32.gmra.mrb[0].mxu0 %v677
        %v747 = vpop.f32.mrb[0].mxu0
        %v748 = vadd.f32 0.0, %v747
        %v749 = vpop.f32.mrb[0].mxu0
        %750 = vdwg.mxu0
        %751 = vrot.lane.b32.xlu0 %v365, 96
        %v752 = vpop.permute.xlu0 %751
        %v753 = vsel %vm372, %v365, 0
        %v755 = vsel %vm372, %v752, 0
        %757 = vmatprep.subr.mxu0 0.0
        %758 = vmatpush1.xpose.msra.mxu0 %v755
        %759 = vmatprep.subr.mxu0 0.0
        %760 = vmatpush1.xpose.msra.mxu0 0.0
        %761 = vmatprep.subr.mxu0 0.0
        %762 = vmatpush1.xpose.msra.mxu0 0.0
        %763 = vmatprep.subr.mxu0 0.0
        %764 = vmatpush1.xpose.msra.mxu0 0.0
        %765 = vmatprep.subr.mxu0 0.0
        %766 = vmatpush1.xpose.msra.mxu0 0.0
        %767 = vmatprep.subr.mxu0 0.0
        %768 = vmatpush1.xpose.msra.mxu0 0.0
        %769 = vmatprep.subr.mxu0 0.0
        %770 = vmatpush1.xpose.msra.mxu0 0.0
        %771 = vmatprep.subr.mxu0 0.0
        %772 = vmatpush1.xpose.msra.mxu0 0.0
        %773 = vmatprep.subr.mxu0 0.0
        %774 = vmatpush1.xpose.msra.mxu0 0.0
        %775 = vmatprep.subr.mxu0 0.0
        %776 = vmatpush1.xpose.msra.mxu0 0.0
        %777 = vmatprep.subr.mxu0 0.0
        %778 = vmatpush1.xpose.msra.mxu0 0.0
        %779 = vmatprep.subr.mxu0 0.0
        %780 = vmatpush1.xpose.msra.mxu0 0.0
        %781 = vmatprep.subr.mxu0 0.0
        %782 = vmatpush1.xpose.msra.mxu0 0.0
        %783 = vmatprep.subr.mxu0 0.0
        %784 = vmatpush1.xpose.msra.mxu0 0.0
        %785 = vmatprep.subr.mxu0 0.0
        %786 = vmatpush1.xpose.msra.mxu0 0.0
        %787 = vmatprep.subr.mxu0 0.0
        %788 = vmatpush1.xpose.msra.mxu0 0.0
        %789 = vmatprep.subr.mxu0 0.0
        %790 = vmatpush1.xpose.msra.mxu0 0.0
        %791 = vmatprep.subr.mxu0 0.0
        %792 = vmatpush1.xpose.msra.mxu0 0.0
        %793 = vmatprep.subr.mxu0 0.0
        %794 = vmatpush1.xpose.msra.mxu0 0.0
        %795 = vmatprep.subr.mxu0 0.0
        %796 = vmatpush1.xpose.msra.mxu0 0.0
        %797 = vmatprep.subr.mxu0 0.0
        %798 = vmatpush1.xpose.msra.mxu0 0.0
        %799 = vmatprep.subr.mxu0 0.0
        %800 = vmatpush1.xpose.msra.mxu0 0.0
        %801 = vmatprep.subr.mxu0 0.0
        %802 = vmatpush1.xpose.msra.mxu0 0.0
        %803 = vmatprep.subr.mxu0 0.0
        %804 = vmatpush1.xpose.msra.mxu0 0.0
        %805 = vmatprep.subr.mxu0 0.0
        %806 = vmatpush1.xpose.msra.mxu0 0.0
        %807 = vmatprep.subr.mxu0 0.0
        %808 = vmatpush1.xpose.msra.mxu0 0.0
        %809 = vmatprep.subr.mxu0 0.0
        %810 = vmatpush1.xpose.msra.mxu0 0.0
        %811 = vmatprep.subr.mxu0 0.0
        %812 = vmatpush1.xpose.msra.mxu0 0.0
        %813 = vmatprep.subr.mxu0 0.0
        %814 = vmatpush1.xpose.msra.mxu0 0.0
        %815 = vmatprep.subr.mxu0 0.0
        %816 = vmatpush1.xpose.msra.mxu0 0.0
        %817 = vmatprep.subr.mxu0 0.0
        %818 = vmatpush1.xpose.msra.mxu0 0.0
        %819 = vmatprep.subr.mxu0 0.0
        %820 = vmatpush1.xpose.msra.mxu0 0.0
        %821 = vmatprep.mubr.f32.mxu0 0.0
        %822 = vmatmul.mubr.f32.gmra.mrb[0].mxu0 %v753
        %v823 = vpop.f32.mrb[0].mxu0
        %v824 = vadd.f32 0.0, %v823
        %v825 = vpop.f32.mrb[0].mxu0
        %826 = vdwg.mxu0
        %827 = vrot.lane.b32.xlu0 %v367, 96
        %v828 = vpop.permute.xlu0 %827
        %v829 = vsel %vm372, %v367, 0
        %v831 = vsel %vm372, %v828, 0
        %833 = vmatprep.subr.mxu0 0.0
        %834 = vmatpush1.xpose.msra.mxu0 %v831
        %835 = vmatprep.subr.mxu0 0.0
        %836 = vmatpush1.xpose.msra.mxu0 0.0
        %837 = vmatprep.subr.mxu0 0.0
        %838 = vmatpush1.xpose.msra.mxu0 0.0
        %839 = vmatprep.subr.mxu0 0.0
        %840 = vmatpush1.xpose.msra.mxu0 0.0
        %841 = vmatprep.subr.mxu0 0.0
        %842 = vmatpush1.xpose.msra.mxu0 0.0
        %843 = vmatprep.subr.mxu0 0.0
        %844 = vmatpush1.xpose.msra.mxu0 0.0
        %845 = vmatprep.subr.mxu0 0.0
        %846 = vmatpush1.xpose.msra.mxu0 0.0
        %847 = vmatprep.subr.mxu0 0.0
        %848 = vmatpush1.xpose.msra.mxu0 0.0
        %849 = vmatprep.subr.mxu0 0.0
        %850 = vmatpush1.xpose.msra.mxu0 0.0
        %851 = vmatprep.subr.mxu0 0.0
        %852 = vmatpush1.xpose.msra.mxu0 0.0
        %853 = vmatprep.subr.mxu0 0.0
        %854 = vmatpush1.xpose.msra.mxu0 0.0
        %855 = vmatprep.subr.mxu0 0.0
        %856 = vmatpush1.xpose.msra.mxu0 0.0
        %857 = vmatprep.subr.mxu0 0.0
        %858 = vmatpush1.xpose.msra.mxu0 0.0
        %859 = vmatprep.subr.mxu0 0.0
        %860 = vmatpush1.xpose.msra.mxu0 0.0
        %861 = vmatprep.subr.mxu0 0.0
        %862 = vmatpush1.xpose.msra.mxu0 0.0
        %863 = vmatprep.subr.mxu0 0.0
        %864 = vmatpush1.xpose.msra.mxu0 0.0
        %865 = vmatprep.subr.mxu0 0.0
        %866 = vmatpush1.xpose.msra.mxu0 0.0
        %867 = vmatprep.subr.mxu0 0.0
        %868 = vmatpush1.xpose.msra.mxu0 0.0
        %869 = vmatprep.subr.mxu0 0.0
        %870 = vmatpush1.xpose.msra.mxu0 0.0
        %871 = vmatprep.subr.mxu0 0.0
        %872 = vmatpush1.xpose.msra.mxu0 0.0
        %873 = vmatprep.subr.mxu0 0.0
        %874 = vmatpush1.xpose.msra.mxu0 0.0
        %875 = vmatprep.subr.mxu0 0.0
        %876 = vmatpush1.xpose.msra.mxu0 0.0
        %877 = vmatprep.subr.mxu0 0.0
        %878 = vmatpush1.xpose.msra.mxu0 0.0
        %879 = vmatprep.subr.mxu0 0.0
        %880 = vmatpush1.xpose.msra.mxu0 0.0
        %881 = vmatprep.subr.mxu0 0.0
        %882 = vmatpush1.xpose.msra.mxu0 0.0
        %883 = vmatprep.subr.mxu0 0.0
        %884 = vmatpush1.xpose.msra.mxu0 0.0
        %885 = vmatprep.subr.mxu0 0.0
        %886 = vmatpush1.xpose.msra.mxu0 0.0
        %887 = vmatprep.subr.mxu0 0.0
        %888 = vmatpush1.xpose.msra.mxu0 0.0
        %889 = vmatprep.subr.mxu0 0.0
        %890 = vmatpush1.xpose.msra.mxu0 0.0
        %891 = vmatprep.subr.mxu0 0.0
        %892 = vmatpush1.xpose.msra.mxu0 0.0
        %893 = vmatprep.subr.mxu0 0.0
        %894 = vmatpush1.xpose.msra.mxu0 0.0
        %895 = vmatprep.subr.mxu0 0.0
        %896 = vmatpush1.xpose.msra.mxu0 0.0
        %897 = vmatprep.mubr.f32.mxu0 0.0
        %898 = vmatmul.mubr.f32.gmra.mrb[0].mxu0 %v829
        %v899 = vpop.f32.mrb[0].mxu0
        %v900 = vadd.f32 0.0, %v899
        %v901 = vpop.f32.mrb[0].mxu0
        %902 = vdwg.mxu0
        %903 = vrot.lane.b32.xlu0 %v369, 96
        %v904 = vpop.permute.xlu0 %903
        %v905 = vsel %vm372, %v369, 0
        %v907 = vsel %vm372, %v904, 0
        %909 = vmatprep.subr.mxu0 0.0
        %910 = vmatpush1.xpose.msra.mxu0 %v907
        %911 = vmatprep.subr.mxu0 0.0
        %912 = vmatpush1.xpose.msra.mxu0 0.0
        %913 = vmatprep.subr.mxu0 0.0
        %914 = vmatpush1.xpose.msra.mxu0 0.0
        %915 = vmatprep.subr.mxu0 0.0
        %916 = vmatpush1.xpose.msra.mxu0 0.0
        %917 = vmatprep.subr.mxu0 0.0
        %918 = vmatpush1.xpose.msra.mxu0 0.0
        %919 = vmatprep.subr.mxu0 0.0
        %920 = vmatpush1.xpose.msra.mxu0 0.0
        %921 = vmatprep.subr.mxu0 0.0
        %922 = vmatpush1.xpose.msra.mxu0 0.0
        %923 = vmatprep.subr.mxu0 0.0
        %924 = vmatpush1.xpose.msra.mxu0 0.0
        %925 = vmatprep.subr.mxu0 0.0
        %926 = vmatpush1.xpose.msra.mxu0 0.0
        %927 = vmatprep.subr.mxu0 0.0
        %928 = vmatpush1.xpose.msra.mxu0 0.0
        %929 = vmatprep.subr.mxu0 0.0
        %930 = vmatpush1.xpose.msra.mxu0 0.0
        %931 = vmatprep.subr.mxu0 0.0
        %932 = vmatpush1.xpose.msra.mxu0 0.0
        %933 = vmatprep.subr.mxu0 0.0
        %934 = vmatpush1.xpose.msra.mxu0 0.0
        %935 = vmatprep.subr.mxu0 0.0
        %936 = vmatpush1.xpose.msra.mxu0 0.0
        %937 = vmatprep.subr.mxu0 0.0
        %938 = vmatpush1.xpose.msra.mxu0 0.0
        %939 = vmatprep.subr.mxu0 0.0
        %940 = vmatpush1.xpose.msra.mxu0 0.0
        %941 = vmatprep.subr.mxu0 0.0
        %942 = vmatpush1.xpose.msra.mxu0 0.0
        %943 = vmatprep.subr.mxu0 0.0
        %944 = vmatpush1.xpose.msra.mxu0 0.0
        %945 = vmatprep.subr.mxu0 0.0
        %946 = vmatpush1.xpose.msra.mxu0 0.0
        %947 = vmatprep.subr.mxu0 0.0
        %948 = vmatpush1.xpose.msra.mxu0 0.0
        %949 = vmatprep.subr.mxu0 0.0
        %950 = vmatpush1.xpose.msra.mxu0 0.0
        %951 = vmatprep.subr.mxu0 0.0
        %952 = vmatpush1.xpose.msra.mxu0 0.0
        %953 = vmatprep.subr.mxu0 0.0
        %954 = vmatpush1.xpose.msra.mxu0 0.0
        %955 = vmatprep.subr.mxu0 0.0
        %956 = vmatpush1.xpose.msra.mxu0 0.0
        %957 = vmatprep.subr.mxu0 0.0
        %958 = vmatpush1.xpose.msra.mxu0 0.0
        %959 = vmatprep.subr.mxu0 0.0
        %960 = vmatpush1.xpose.msra.mxu0 0.0
        %961 = vmatprep.subr.mxu0 0.0
        %962 = vmatpush1.xpose.msra.mxu0 0.0
        %963 = vmatprep.subr.mxu0 0.0
        %964 = vmatpush1.xpose.msra.mxu0 0.0
        %965 = vmatprep.subr.mxu0 0.0
        %966 = vmatpush1.xpose.msra.mxu0 0.0
        %967 = vmatprep.subr.mxu0 0.0
        %968 = vmatpush1.xpose.msra.mxu0 0.0
        %969 = vmatprep.subr.mxu0 0.0
        %970 = vmatpush1.xpose.msra.mxu0 0.0
        %971 = vmatprep.subr.mxu0 0.0
        %972 = vmatpush1.xpose.msra.mxu0 0.0
        %973 = vmatprep.mubr.f32.mxu0 0.0
        %974 = vmatmul.mubr.f32.gmra.mrb[0].mxu0 %v905
        %v975 = vpop.f32.mrb[0].mxu0
        %v976 = vadd.f32 0.0, %v975
        %v977 = vpop.f32.mrb[0].mxu0
        %978 = vdwg.mxu0
        %v979 = vmul.f32 %v444, 0.5
        %v980 = vmul.f32 %v520, 0.5
        %v981 = vmul.f32 %v596, 0.5
        %v982 = vmul.f32 %v672, 0.5
        %v983 = vmul.f32 %v748, 0.5
        %v984 = vmul.f32 %v824, 0.5
        %v985 = vmul.f32 %v900, 0.5
        %v986 = vmul.f32 %v976, 0.5
        %vm987 = vcmask 64512
        %v988 = vsel %vm987, %v979, -inf
        %989 = vmax.xlane.f32.xlu0 %v988
        %v990 = vpop.xlane.xlu0 %989
        %v991 = vsel %vm987, %v980, -inf
        %992 = vmax.xlane.f32.xlu0 %v991
        %v993 = vpop.xlane.xlu0 %992
        %v994 = vsel %vm987, %v981, -inf
        %995 = vmax.xlane.f32.xlu0 %v994
        %v996 = vpop.xlane.xlu0 %995
        %v997 = vsel %vm987, %v982, -inf
        %998 = vmax.xlane.f32.xlu0 %v997
        %v999 = vpop.xlane.xlu0 %998
        %v1000 = vsel %vm987, %v983, -inf
        %1001 = vmax.xlane.f32.xlu0 %v1000
        %v1002 = vpop.xlane.xlu0 %1001
        %v1003 = vsel %vm987, %v984, -inf
        %1004 = vmax.xlane.f32.xlu0 %v1003
        %v1005 = vpop.xlane.xlu0 %1004
        %v1006 = vsel %vm987, %v985, -inf
        %1007 = vmax.xlane.f32.xlu0 %v1006
        %v1008 = vpop.xlane.xlu0 %1007
        %v1009 = vsel %vm987, %v986, -inf
        %1010 = vmax.xlane.f32.xlu0 %v1009
        %v1011 = vpop.xlane.xlu0 %1010
        %v1012 = vsub.f32 %v979, %v990
        %v1013 = vsub.f32 %v980, %v993
        %v1014 = vsub.f32 %v981, %v996
        %v1015 = vsub.f32 %v982, %v999
        %v1016 = vsub.f32 %v983, %v1002
        %v1017 = vsub.f32 %v984, %v1005
        %v1018 = vsub.f32 %v985, %v1008
        %v1019 = vsub.f32 %v986, %v1011
        %v1020 = vmul.f32 %v1012, 1.442695
        %v1021 = vpow.pop %v1020
        %v1022 = vmul.f32 %v1013, 1.442695
        %v1023 = vpow.pop %v1022
        %v1024 = vmul.f32 %v1014, 1.442695
        %v1025 = vpow.pop %v1024
        %v1026 = vmul.f32 %v1015, 1.442695
        %v1027 = vpow.pop %v1026
        %v1028 = vmul.f32 %v1016, 1.442695
        %v1029 = vpow.pop %v1028
        %v1030 = vmul.f32 %v1017, 1.442695
        %v1031 = vpow.pop %v1030
        %v1032 = vmul.f32 %v1018, 1.442695
        %v1033 = vpow.pop %v1032
        %v1034 = vmul.f32 %v1019, 1.442695
        %v1035 = vpow.pop %v1034
        %v1036 = vsel %vm987, %v1021, 0.0
        %1037 = vadd.xlane.f32.xlu0 %v1036
        %v1038 = vpop.xlane.xlu0 %1037
        %v1039 = vsel %vm987, %v1023, 0.0
        %1040 = vadd.xlane.f32.xlu0 %v1039
        %v1041 = vpop.xlane.xlu0 %1040
        %v1042 = vsel %vm987, %v1025, 0.0
        %1043 = vadd.xlane.f32.xlu0 %v1042
        %v1044 = vpop.xlane.xlu0 %1043
        %v1045 = vsel %vm987, %v1027, 0.0
        %1046 = vadd.xlane.f32.xlu0 %v1045
        %v1047 = vpop.xlane.xlu0 %1046
        %v1048 = vsel %vm987, %v1029, 0.0
        %1049 = vadd.xlane.f32.xlu0 %v1048
        %v1050 = vpop.xlane.xlu0 %1049
        %v1051 = vsel %vm987, %v1031, 0.0
        %1052 = vadd.xlane.f32.xlu0 %v1051
        %v1053 = vpop.xlane.xlu0 %1052
        %v1054 = vsel %vm987, %v1033, 0.0
        %1055 = vadd.xlane.f32.xlu0 %v1054
        %v1056 = vpop.xlane.xlu0 %1055
        %v1057 = vsel %vm987, %v1035, 0.0
        %1058 = vadd.xlane.f32.xlu0 %v1057
        %v1059 = vpop.xlane.xlu0 %1058
        %v1060 = vrcp.pop %v1038
        %v1061 = vrcp.pop %v1041
        %v1062 = vrcp.pop %v1044
        %v1063 = vrcp.pop %v1047
        %v1064 = vrcp.pop %v1050
        %v1065 = vrcp.pop %v1053
        %v1066 = vrcp.pop %v1056
        %v1067 = vrcp.pop %v1059
        %v1068 = vmul.f32 %v1021, %v1060
        %v1069 = vmul.f32 %v1023, %v1061
        %v1070 = vmul.f32 %v1025, %v1062
        %v1071 = vmul.f32 %v1027, %v1063
        %v1072 = vmul.f32 %v1029, %v1064
        %v1073 = vmul.f32 %v1031, %v1065
        %v1074 = vmul.f32 %v1033, %v1066
        %v1075 = vmul.f32 %v1035, %v1067
        %1076 = vrot.lane.b32.xlu0 %v352, 64
        %v1077 = vpop.permute.xlu0 %1076
        %v1080 = vsel %vm987, %v1068, 0
        %1082 = vmatprep.subr.mxu0 0.0
        %1083 = vmatpush1.msra.mxu0 %v1077
        %1084 = vmatprep.subr.mxu0 0.0
        %1085 = vmatpush1.msra.mxu0 0.0
        %1086 = vmatprep.subr.mxu0 0.0
        %1087 = vmatpush1.msra.mxu0 0.0
        %1088 = vmatprep.subr.mxu0 0.0
        %1089 = vmatpush1.msra.mxu0 0.0
        %1090 = vmatprep.subr.mxu0 0.0
        %1091 = vmatpush1.msra.mxu0 0.0
        %1092 = vmatprep.subr.mxu0 0.0
        %1093 = vmatpush1.msra.mxu0 0.0
        %1094 = vmatprep.subr.mxu0 0.0
        %1095 = vmatpush1.msra.mxu0 0.0
        %1096 = vmatprep.subr.mxu0 0.0
        %1097 = vmatpush1.msra.mxu0 0.0
        %1098 = vmatprep.subr.mxu0 0.0
        %1099 = vmatpush1.msra.mxu0 0.0
        %1100 = vmatprep.subr.mxu0 0.0
        %1101 = vmatpush1.msra.mxu0 0.0
        %1102 = vmatprep.subr.mxu0 0.0
        %1103 = vmatpush1.msra.mxu0 0.0
        %1104 = vmatprep.subr.mxu0 0.0
        %1105 = vmatpush1.msra.mxu0 0.0
        %1106 = vmatprep.subr.mxu0 0.0
        %1107 = vmatpush1.msra.mxu0 0.0
        %1108 = vmatprep.subr.mxu0 0.0
        %1109 = vmatpush1.msra.mxu0 0.0
        %1110 = vmatprep.subr.mxu0 0.0
        %1111 = vmatpush1.msra.mxu0 0.0
        %1112 = vmatprep.subr.mxu0 0.0
        %1113 = vmatpush1.msra.mxu0 0.0
        %1114 = vmatprep.subr.mxu0 0.0
        %1115 = vmatpush1.msra.mxu0 0.0
        %1116 = vmatprep.subr.mxu0 0.0
        %1117 = vmatpush1.msra.mxu0 0.0
        %1118 = vmatprep.subr.mxu0 0.0
        %1119 = vmatpush1.msra.mxu0 0.0
        %1120 = vmatprep.subr.mxu0 0.0
        %1121 = vmatpush1.msra.mxu0 0.0
        %1122 = vmatprep.subr.mxu0 0.0
        %1123 = vmatpush1.msra.mxu0 0.0
        %1124 = vmatprep.subr.mxu0 0.0
        %1125 = vmatpush1.msra.mxu0 0.0
        %1126 = vmatprep.subr.mxu0 0.0
        %1127 = vmatpush1.msra.mxu0 0.0
        %1128 = vmatprep.subr.mxu0 0.0
        %1129 = vmatpush1.msra.mxu0 0.0
        %1130 = vmatprep.subr.mxu0 0.0
        %1131 = vmatpush1.msra.mxu0 0.0
        %1132 = vmatprep.subr.mxu0 0.0
        %1133 = vmatpush1.msra.mxu0 0.0
        %1134 = vmatprep.subr.mxu0 0.0
        %1135 = vmatpush1.msra.mxu0 0.0
        %1136 = vmatprep.subr.mxu0 0.0
        %1137 = vmatpush1.msra.mxu0 0.0
        %1138 = vmatprep.subr.mxu0 0.0
        %1139 = vmatpush1.msra.mxu0 0.0
        %1140 = vmatprep.subr.mxu0 0.0
        %1141 = vmatpush1.msra.mxu0 0.0
        %1142 = vmatprep.subr.mxu0 0.0
        %1143 = vmatpush1.msra.mxu0 0.0
        %1144 = vmatprep.subr.mxu0 0.0
        %1145 = vmatpush1.msra.mxu0 0.0
        %1146 = vmatprep.mubr.f32.mxu0 0.0
        %1147 = vmatmul.mubr.f32.gmra.mrb[0].mxu0 %v1080
        %v1148 = vpop.f32.mrb[0].mxu0
        %v1149 = vadd.f32 0.0, %v1148
        %v1150 = vpop.f32.mrb[0].mxu0
        %1151 = vdwg.mxu0
        %1152 = vrot.lane.b32.xlu0 %v357, 64
        %v1153 = vpop.permute.xlu0 %1152
        %v1156 = vsel %vm987, %v1069, 0
        %1158 = vmatprep.subr.mxu0 0.0
        %1159 = vmatpush1.msra.mxu0 %v1153
        %1160 = vmatprep.subr.mxu0 0.0
        %1161 = vmatpush1.msra.mxu0 0.0
        %1162 = vmatprep.subr.mxu0 0.0
        %1163 = vmatpush1.msra.mxu0 0.0
        %1164 = vmatprep.subr.mxu0 0.0
        %1165 = vmatpush1.msra.mxu0 0.0
        %1166 = vmatprep.subr.mxu0 0.0
        %1167 = vmatpush1.msra.mxu0 0.0
        %1168 = vmatprep.subr.mxu0 0.0
        %1169 = vmatpush1.msra.mxu0 0.0
        %1170 = vmatprep.subr.mxu0 0.0
        %1171 = vmatpush1.msra.mxu0 0.0
        %1172 = vmatprep.subr.mxu0 0.0
        %1173 = vmatpush1.msra.mxu0 0.0
        %1174 = vmatprep.subr.mxu0 0.0
        %1175 = vmatpush1.msra.mxu0 0.0
        %1176 = vmatprep.subr.mxu0 0.0
        %1177 = vmatpush1.msra.mxu0 0.0
        %1178 = vmatprep.subr.mxu0 0.0
        %1179 = vmatpush1.msra.mxu0 0.0
        %1180 = vmatprep.subr.mxu0 0.0
        %1181 = vmatpush1.msra.mxu0 0.0
        %1182 = vmatprep.subr.mxu0 0.0
        %1183 = vmatpush1.msra.mxu0 0.0
        %1184 = vmatprep.subr.mxu0 0.0
        %1185 = vmatpush1.msra.mxu0 0.0
        %1186 = vmatprep.subr.mxu0 0.0
        %1187 = vmatpush1.msra.mxu0 0.0
        %1188 = vmatprep.subr.mxu0 0.0
        %1189 = vmatpush1.msra.mxu0 0.0
        %1190 = vmatprep.subr.mxu0 0.0
        %1191 = vmatpush1.msra.mxu0 0.0
        %1192 = vmatprep.subr.mxu0 0.0
        %1193 = vmatpush1.msra.mxu0 0.0
        %1194 = vmatprep.subr.mxu0 0.0
        %1195 = vmatpush1.msra.mxu0 0.0
        %1196 = vmatprep.subr.mxu0 0.0
        %1197 = vmatpush1.msra.mxu0 0.0
        %1198 = vmatprep.subr.mxu0 0.0
        %1199 = vmatpush1.msra.mxu0 0.0
        %1200 = vmatprep.subr.mxu0 0.0
        %1201 = vmatpush1.msra.mxu0 0.0
        %1202 = vmatprep.subr.mxu0 0.0
        %1203 = vmatpush1.msra.mxu0 0.0
        %1204 = vmatprep.subr.mxu0 0.0
        %1205 = vmatpush1.msra.mxu0 0.0
        %1206 = vmatprep.subr.mxu0 0.0
        %1207 = vmatpush1.msra.mxu0 0.0
        %1208 = vmatprep.subr.mxu0 0.0
        %1209 = vmatpush1.msra.mxu0 0.0
        %1210 = vmatprep.subr.mxu0 0.0
        %1211 = vmatpush1.msra.mxu0 0.0
        %1212 = vmatprep.subr.mxu0 0.0
        %1213 = vmatpush1.msra.mxu0 0.0
        %1214 = vmatprep.subr.mxu0 0.0
        %1215 = vmatpush1.msra.mxu0 0.0
        %1216 = vmatprep.subr.mxu0 0.0
        %1217 = vmatpush1.msra.mxu0 0.0
        %1218 = vmatprep.subr.mxu0 0.0
        %1219 = vmatpush1.msra.mxu0 0.0
        %1220 = vmatprep.subr.mxu0 0.0
        %1221 = vmatpush1.msra.mxu0 0.0
        %1222 = vmatprep.mubr.f32.mxu0 0.0
        %1223 = vmatmul.mubr.f32.gmra.mrb[0].mxu0 %v1156
        %v1224 = vpop.f32.mrb[0].mxu0
        %v1225 = vadd.f32 0.0, %v1224
        %v1226 = vpop.f32.mrb[0].mxu0
        %1227 = vdwg.mxu0
        %1228 = vrot.lane.b32.xlu0 %v359, 64
        %v1229 = vpop.permute.xlu0 %1228
        %v1232 = vsel %vm987, %v1070, 0
        %1234 = vmatprep.subr.mxu0 0.0
        %1235 = vmatpush1.msra.mxu0 %v1229
        %1236 = vmatprep.subr.mxu0 0.0
        %1237 = vmatpush1.msra.mxu0 0.0
        %1238 = vmatprep.subr.mxu0 0.0
        %1239 = vmatpush1.msra.mxu0 0.0
        %1240 = vmatprep.subr.mxu0 0.0
        %1241 = vmatpush1.msra.mxu0 0.0
        %1242 = vmatprep.subr.mxu0 0.0
        %1243 = vmatpush1.msra.mxu0 0.0
        %1244 = vmatprep.subr.mxu0 0.0
        %1245 = vmatpush1.msra.mxu0 0.0
        %1246 = vmatprep.subr.mxu0 0.0
        %1247 = vmatpush1.msra.mxu0 0.0
        %1248 = vmatprep.subr.mxu0 0.0
        %1249 = vmatpush1.msra.mxu0 0.0
        %1250 = vmatprep.subr.mxu0 0.0
        %1251 = vmatpush1.msra.mxu0 0.0
        %1252 = vmatprep.subr.mxu0 0.0
        %1253 = vmatpush1.msra.mxu0 0.0
        %1254 = vmatprep.subr.mxu0 0.0
        %1255 = vmatpush1.msra.mxu0 0.0
        %1256 = vmatprep.subr.mxu0 0.0
        %1257 = vmatpush1.msra.mxu0 0.0
        %1258 = vmatprep.subr.mxu0 0.0
        %1259 = vmatpush1.msra.mxu0 0.0
        %1260 = vmatprep.subr.mxu0 0.0
        %1261 = vmatpush1.msra.mxu0 0.0
        %1262 = vmatprep.subr.mxu0 0.0
        %1263 = vmatpush1.msra.mxu0 0.0
        %1264 = vmatprep.subr.mxu0 0.0
        %1265 = vmatpush1.msra.mxu0 0.0
        %1266 = vmatprep.subr.mxu0 0.0
        %1267 = vmatpush1.msra.mxu0 0.0
        %1268 = vmatprep.subr.mxu0 0.0
        %1269 = vmatpush1.msra.mxu0 0.0
        %1270 = vmatprep.subr.mxu0 0.0
        %1271 = vmatpush1.msra.mxu0 0.0
        %1272 = vmatprep.subr.mxu0 0.0
        %1273 = vmatpush1.msra.mxu0 0.0
        %1274 = vmatprep.subr.mxu0 0.0
        %1275 = vmatpush1.msra.mxu0 0.0
        %1276 = vmatprep.subr.mxu0 0.0
        %1277 = vmatpush1.msra.mxu0 0.0
        %1278 = vmatprep.subr.mxu0 0.0
        %1279 = vmatpush1.msra.mxu0 0.0
        %1280 = vmatprep.subr.mxu0 0.0
        %1281 = vmatpush1.msra.mxu0 0.0
        %1282 = vmatprep.subr.mxu0 0.0
        %1283 = vmatpush1.msra.mxu0 0.0
        %1284 = vmatprep.subr.mxu0 0.0
        %1285 = vmatpush1.msra.mxu0 0.0
        %1286 = vmatprep.subr.mxu0 0.0
        %1287 = vmatpush1.msra.mxu0 0.0
        %1288 = vmatprep.subr.mxu0 0.0
        %1289 = vmatpush1.msra.mxu0 0.0
        %1290 = vmatprep.subr.mxu0 0.0
        %1291 = vmatpush1.msra.mxu0 0.0
        %1292 = vmatprep.subr.mxu0 0.0
        %1293 = vmatpush1.msra.mxu0 0.0
        %1294 = vmatprep.subr.mxu0 0.0
        %1295 = vmatpush1.msra.mxu0 0.0
        %1296 = vmatprep.subr.mxu0 0.0
        %1297 = vmatpush1.msra.mxu0 0.0
        %1298 = vmatprep.mubr.f32.mxu0 0.0
        %1299 = vmatmul.mubr.f32.gmra.mrb[0].mxu0 %v1232
        %v1300 = vpop.f32.mrb[0].mxu0
        %v1301 = vadd.f32 0.0, %v1300
        %v1302 = vpop.f32.mrb[0].mxu0
        %1303 = vdwg.mxu0
        %1304 = vrot.lane.b32.xlu0 %v361, 64
        %v1305 = vpop.permute.xlu0 %1304
        %v1308 = vsel %vm987, %v1071, 0
        %1310 = vmatprep.subr.mxu0 0.0
        %1311 = vmatpush1.msra.mxu0 %v1305
        %1312 = vmatprep.subr.mxu0 0.0
        %1313 = vmatpush1.msra.mxu0 0.0
        %1314 = vmatprep.subr.mxu0 0.0
        %1315 = vmatpush1.msra.mxu0 0.0
        %1316 = vmatprep.subr.mxu0 0.0
        %1317 = vmatpush1.msra.mxu0 0.0
        %1318 = vmatprep.subr.mxu0 0.0
        %1319 = vmatpush1.msra.mxu0 0.0
        %1320 = vmatprep.subr.mxu0 0.0
        %1321 = vmatpush1.msra.mxu0 0.0
        %1322 = vmatprep.subr.mxu0 0.0
        %1323 = vmatpush1.msra.mxu0 0.0
        %1324 = vmatprep.subr.mxu0 0.0
        %1325 = vmatpush1.msra.mxu0 0.0
        %1326 = vmatprep.subr.mxu0 0.0
        %1327 = vmatpush1.msra.mxu0 0.0
        %1328 = vmatprep.subr.mxu0 0.0
        %1329 = vmatpush1.msra.mxu0 0.0
        %1330 = vmatprep.subr.mxu0 0.0
        %1331 = vmatpush1.msra.mxu0 0.0
        %1332 = vmatprep.subr.mxu0 0.0
        %1333 = vmatpush1.msra.mxu0 0.0
        %1334 = vmatprep.subr.mxu0 0.0
        %1335 = vmatpush1.msra.mxu0 0.0
        %1336 = vmatprep.subr.mxu0 0.0
        %1337 = vmatpush1.msra.mxu0 0.0
        %1338 = vmatprep.subr.mxu0 0.0
        %1339 = vmatpush1.msra.mxu0 0.0
        %1340 = vmatprep.subr.mxu0 0.0
        %1341 = vmatpush1.msra.mxu0 0.0
        %1342 = vmatprep.subr.mxu0 0.0
        %1343 = vmatpush1.msra.mxu0 0.0
        %1344 = vmatprep.subr.mxu0 0.0
        %1345 = vmatpush1.msra.mxu0 0.0
        %1346 = vmatprep.subr.mxu0 0.0
        %1347 = vmatpush1.msra.mxu0 0.0
        %1348 = vmatprep.subr.mxu0 0.0
        %1349 = vmatpush1.msra.mxu0 0.0
        %1350 = vmatprep.subr.mxu0 0.0
        %1351 = vmatpush1.msra.mxu0 0.0
        %1352 = vmatprep.subr.mxu0 0.0
        %1353 = vmatpush1.msra.mxu0 0.0
        %1354 = vmatprep.subr.mxu0 0.0
        %1355 = vmatpush1.msra.mxu0 0.0
        %1356 = vmatprep.subr.mxu0 0.0
        %1357 = vmatpush1.msra.mxu0 0.0
        %1358 = vmatprep.subr.mxu0 0.0
        %1359 = vmatpush1.msra.mxu0 0.0
        %1360 = vmatprep.subr.mxu0 0.0
        %1361 = vmatpush1.msra.mxu0 0.0
        %1362 = vmatprep.subr.mxu0 0.0
        %1363 = vmatpush1.msra.mxu0 0.0
        %1364 = vmatprep.subr.mxu0 0.0
        %1365 = vmatpush1.msra.mxu0 0.0
        %1366 = vmatprep.subr.mxu0 0.0
        %1367 = vmatpush1.msra.mxu0 0.0
        %1368 = vmatprep.subr.mxu0 0.0
        %1369 = vmatpush1.msra.mxu0 0.0
        %1370 = vmatprep.subr.mxu0 0.0
        %1371 = vmatpush1.msra.mxu0 0.0
        %1372 = vmatprep.subr.mxu0 0.0
        %1373 = vmatpush1.msra.mxu0 0.0
        %1374 = vmatprep.mubr.f32.mxu0 0.0
        %1375 = vmatmul.mubr.f32.gmra.mrb[0].mxu0 %v1308
        %v1376 = vpop.f32.mrb[0].mxu0
        %v1377 = vadd.f32 0.0, %v1376
        %v1378 = vpop.f32.mrb[0].mxu0
        %1379 = vdwg.mxu0
        %1380 = vrot.lane.b32.xlu0 %v363, 64
        %v1381 = vpop.permute.xlu0 %1380
        %v1384 = vsel %vm987, %v1072, 0
        %1386 = vmatprep.subr.mxu0 0.0
        %1387 = vmatpush1.msra.mxu0 %v1381
        %1388 = vmatprep.subr.mxu0 0.0
        %1389 = vmatpush1.msra.mxu0 0.0
        %1390 = vmatprep.subr.mxu0 0.0
        %1391 = vmatpush1.msra.mxu0 0.0
        %1392 = vmatprep.subr.mxu0 0.0
        %1393 = vmatpush1.msra.mxu0 0.0
        %1394 = vmatprep.subr.mxu0 0.0
        %1395 = vmatpush1.msra.mxu0 0.0
        %1396 = vmatprep.subr.mxu0 0.0
        %1397 = vmatpush1.msra.mxu0 0.0
        %1398 = vmatprep.subr.mxu0 0.0
        %1399 = vmatpush1.msra.mxu0 0.0
        %1400 = vmatprep.subr.mxu0 0.0
        %1401 = vmatpush1.msra.mxu0 0.0
        %1402 = vmatprep.subr.mxu0 0.0
        %1403 = vmatpush1.msra.mxu0 0.0
        %1404 = vmatprep.subr.mxu0 0.0
        %1405 = vmatpush1.msra.mxu0 0.0
        %1406 = vmatprep.subr.mxu0 0.0
        %1407 = vmatpush1.msra.mxu0 0.0
        %1408 = vmatprep.subr.mxu0 0.0
        %1409 = vmatpush1.msra.mxu0 0.0
        %1410 = vmatprep.subr.mxu0 0.0
        %1411 = vmatpush1.msra.mxu0 0.0
        %1412 = vmatprep.subr.mxu0 0.0
        %1413 = vmatpush1.msra.mxu0 0.0
        %1414 = vmatprep.subr.mxu0 0.0
        %1415 = vmatpush1.msra.mxu0 0.0
        %1416 = vmatprep.subr.mxu0 0.0
        %1417 = vmatpush1.msra.mxu0 0.0
        %1418 = vmatprep.subr.mxu0 0.0
        %1419 = vmatpush1.msra.mxu0 0.0
        %1420 = vmatprep.subr.mxu0 0.0
        %1421 = vmatpush1.msra.mxu0 0.0
        %1422 = vmatprep.subr.mxu0 0.0
        %1423 = vmatpush1.msra.mxu0 0.0
        %1424 = vmatprep.subr.mxu0 0.0
        %1425 = vmatpush1.msra.mxu0 0.0
        %1426 = vmatprep.subr.mxu0 0.0
        %1427 = vmatpush1.msra.mxu0 0.0
        %1428 = vmatprep.subr.mxu0 0.0
        %1429 = vmatpush1.msra.mxu0 0.0
        %1430 = vmatprep.subr.mxu0 0.0
        %1431 = vmatpush1.msra.mxu0 0.0
        %1432 = vmatprep.subr.mxu0 0.0
        %1433 = vmatpush1.msra.mxu0 0.0
        %1434 = vmatprep.subr.mxu0 0.0
        %1435 = vmatpush1.msra.mxu0 0.0
        %1436 = vmatprep.subr.mxu0 0.0
        %1437 = vmatpush1.msra.mxu0 0.0
        %1438 = vmatprep.subr.mxu0 0.0
        %1439 = vmatpush1.msra.mxu0 0.0
        %1440 = vmatprep.subr.mxu0 0.0
        %1441 = vmatpush1.msra.mxu0 0.0
        %1442 = vmatprep.subr.mxu0 0.0
        %1443 = vmatpush1.msra.mxu0 0.0
        %1444 = vmatprep.subr.mxu0 0.0
        %1445 = vmatpush1.msra.mxu0 0.0
        %1446 = vmatprep.subr.mxu0 0.0
        %1447 = vmatpush1.msra.mxu0 0.0
        %1448 = vmatprep.subr.mxu0 0.0
        %1449 = vmatpush1.msra.mxu0 0.0
        %1450 = vmatprep.mubr.f32.mxu0 0.0
        %1451 = vmatmul.mubr.f32.gmra.mrb[0].mxu0 %v1384
        %v1452 = vpop.f32.mrb[0].mxu0
        %v1453 = vadd.f32 0.0, %v1452
        %v1454 = vpop.f32.mrb[0].mxu0
        %1455 = vdwg.mxu0
        %1456 = vrot.lane.b32.xlu0 %v365, 64
        %v1457 = vpop.permute.xlu0 %1456
        %v1460 = vsel %vm987, %v1073, 0
        %1462 = vmatprep.subr.mxu0 0.0
        %1463 = vmatpush1.msra.mxu0 %v1457
        %1464 = vmatprep.subr.mxu0 0.0
        %1465 = vmatpush1.msra.mxu0 0.0
        %1466 = vmatprep.subr.mxu0 0.0
        %1467 = vmatpush1.msra.mxu0 0.0
        %1468 = vmatprep.subr.mxu0 0.0
        %1469 = vmatpush1.msra.mxu0 0.0
        %1470 = vmatprep.subr.mxu0 0.0
        %1471 = vmatpush1.msra.mxu0 0.0
        %1472 = vmatprep.subr.mxu0 0.0
        %1473 = vmatpush1.msra.mxu0 0.0
        %1474 = vmatprep.subr.mxu0 0.0
        %1475 = vmatpush1.msra.mxu0 0.0
        %1476 = vmatprep.subr.mxu0 0.0
        %1477 = vmatpush1.msra.mxu0 0.0
        %1478 = vmatprep.subr.mxu0 0.0
        %1479 = vmatpush1.msra.mxu0 0.0
        %1480 = vmatprep.subr.mxu0 0.0
        %1481 = vmatpush1.msra.mxu0 0.0
        %1482 = vmatprep.subr.mxu0 0.0
        %1483 = vmatpush1.msra.mxu0 0.0
        %1484 = vmatprep.subr.mxu0 0.0
        %1485 = vmatpush1.msra.mxu0 0.0
        %1486 = vmatprep.subr.mxu0 0.0
        %1487 = vmatpush1.msra.mxu0 0.0
        %1488 = vmatprep.subr.mxu0 0.0
        %1489 = vmatpush1.msra.mxu0 0.0
        %1490 = vmatprep.subr.mxu0 0.0
        %1491 = vmatpush1.msra.mxu0 0.0
        %1492 = vmatprep.subr.mxu0 0.0
        %1493 = vmatpush1.msra.mxu0 0.0
        %1494 = vmatprep.subr.mxu0 0.0
        %1495 = vmatpush1.msra.mxu0 0.0
        %1496 = vmatprep.subr.mxu0 0.0
        %1497 = vmatpush1.msra.mxu0 0.0
        %1498 = vmatprep.subr.mxu0 0.0
        %1499 = vmatpush1.msra.mxu0 0.0
        %1500 = vmatprep.subr.mxu0 0.0
        %1501 = vmatpush1.msra.mxu0 0.0
        %1502 = vmatprep.subr.mxu0 0.0
        %1503 = vmatpush1.msra.mxu0 0.0
        %1504 = vmatprep.subr.mxu0 0.0
        %1505 = vmatpush1.msra.mxu0 0.0
        %1506 = vmatprep.subr.mxu0 0.0
        %1507 = vmatpush1.msra.mxu0 0.0
        %1508 = vmatprep.subr.mxu0 0.0
        %1509 = vmatpush1.msra.mxu0 0.0
        %1510 = vmatprep.subr.mxu0 0.0
        %1511 = vmatpush1.msra.mxu0 0.0
        %1512 = vmatprep.subr.mxu0 0.0
        %1513 = vmatpush1.msra.mxu0 0.0
        %1514 = vmatprep.subr.mxu0 0.0
        %1515 = vmatpush1.msra.mxu0 0.0
        %1516 = vmatprep.subr.mxu0 0.0
        %1517 = vmatpush1.msra.mxu0 0.0
        %1518 = vmatprep.subr.mxu0 0.0
        %1519 = vmatpush1.msra.mxu0 0.0
        %1520 = vmatprep.subr.mxu0 0.0
        %1521 = vmatpush1.msra.mxu0 0.0
        %1522 = vmatprep.subr.mxu0 0.0
        %1523 = vmatpush1.msra.mxu0 0.0
        %1524 = vmatprep.subr.mxu0 0.0
        %1525 = vmatpush1.msra.mxu0 0.0
        %1526 = vmatprep.mubr.f32.mxu0 0.0
        %1527 = vmatmul.mubr.f32.gmra.mrb[0].mxu0 %v1460
        %v1528 = vpop.f32.mrb[0].mxu0
        %v1529 = vadd.f32 0.0, %v1528
        %v1530 = vpop.f32.mrb[0].mxu0
        %1531 = vdwg.mxu0
        %1532 = vrot.lane.b32.xlu0 %v367, 64
        %v1533 = vpop.permute.xlu0 %1532
        %v1536 = vsel %vm987, %v1074, 0
        %1538 = vmatprep.subr.mxu0 0.0
        %1539 = vmatpush1.msra.mxu0 %v1533
        %1540 = vmatprep.subr.mxu0 0.0
        %1541 = vmatpush1.msra.mxu0 0.0
        %1542 = vmatprep.subr.mxu0 0.0
        %1543 = vmatpush1.msra.mxu0 0.0
        %1544 = vmatprep.subr.mxu0 0.0
        %1545 = vmatpush1.msra.mxu0 0.0
        %1546 = vmatprep.subr.mxu0 0.0
        %1547 = vmatpush1.msra.mxu0 0.0
        %1548 = vmatprep.subr.mxu0 0.0
        %1549 = vmatpush1.msra.mxu0 0.0
        %1550 = vmatprep.subr.mxu0 0.0
        %1551 = vmatpush1.msra.mxu0 0.0
        %1552 = vmatprep.subr.mxu0 0.0
        %1553 = vmatpush1.msra.mxu0 0.0
        %1554 = vmatprep.subr.mxu0 0.0
        %1555 = vmatpush1.msra.mxu0 0.0
        %1556 = vmatprep.subr.mxu0 0.0
        %1557 = vmatpush1.msra.mxu0 0.0
        %1558 = vmatprep.subr.mxu0 0.0
        %1559 = vmatpush1.msra.mxu0 0.0
        %1560 = vmatprep.subr.mxu0 0.0
        %1561 = vmatpush1.msra.mxu0 0.0
        %1562 = vmatprep.subr.mxu0 0.0
        %1563 = vmatpush1.msra.mxu0 0.0
        %1564 = vmatprep.subr.mxu0 0.0
        %1565 = vmatpush1.msra.mxu0 0.0
        %1566 = vmatprep.subr.mxu0 0.0
        %1567 = vmatpush1.msra.mxu0 0.0
        %1568 = vmatprep.subr.mxu0 0.0
        %1569 = vmatpush1.msra.mxu0 0.0
        %1570 = vmatprep.subr.mxu0 0.0
        %1571 = vmatpush1.msra.mxu0 0.0
        %1572 = vmatprep.subr.mxu0 0.0
        %1573 = vmatpush1.msra.mxu0 0.0
        %1574 = vmatprep.subr.mxu0 0.0
        %1575 = vmatpush1.msra.mxu0 0.0
        %1576 = vmatprep.subr.mxu0 0.0
        %1577 = vmatpush1.msra.mxu0 0.0
        %1578 = vmatprep.subr.mxu0 0.0
        %1579 = vmatpush1.msra.mxu0 0.0
        %1580 = vmatprep.subr.mxu0 0.0
        %1581 = vmatpush1.msra.mxu0 0.0
        %1582 = vmatprep.subr.mxu0 0.0
        %1583 = vmatpush1.msra.mxu0 0.0
        %1584 = vmatprep.subr.mxu0 0.0
        %1585 = vmatpush1.msra.mxu0 0.0
        %1586 = vmatprep.subr.mxu0 0.0
        %1587 = vmatpush1.msra.mxu0 0.0
        %1588 = vmatprep.subr.mxu0 0.0
        %1589 = vmatpush1.msra.mxu0 0.0
        %1590 = vmatprep.subr.mxu0 0.0
        %1591 = vmatpush1.msra.mxu0 0.0
        %1592 = vmatprep.subr.mxu0 0.0
        %1593 = vmatpush1.msra.mxu0 0.0
        %1594 = vmatprep.subr.mxu0 0.0
        %1595 = vmatpush1.msra.mxu0 0.0
        %1596 = vmatprep.subr.mxu0 0.0
        %1597 = vmatpush1.msra.mxu0 0.0
        %1598 = vmatprep.subr.mxu0 0.0
        %1599 = vmatpush1.msra.mxu0 0.0
        %1600 = vmatprep.subr.mxu0 0.0
        %1601 = vmatpush1.msra.mxu0 0.0
        %1602 = vmatprep.mubr.f32.mxu0 0.0
        %1603 = vmatmul.mubr.f32.gmra.mrb[0].mxu0 %v1536
        %v1604 = vpop.f32.mrb[0].mxu0
        %v1605 = vadd.f32 0.0, %v1604
        %v1606 = vpop.f32.mrb[0].mxu0
        %1607 = vdwg.mxu0
        %1608 = vrot.lane.b32.xlu0 %v369, 64
        %v1609 = vpop.permute.xlu0 %1608
        %v1612 = vsel %vm987, %v1075, 0
        %1614 = vmatprep.subr.mxu0 0.0
        %1615 = vmatpush1.msra.mxu0 %v1609
        %1616 = vmatprep.subr.mxu0 0.0
        %1617 = vmatpush1.msra.mxu0 0.0
        %1618 = vmatprep.subr.mxu0 0.0
        %1619 = vmatpush1.msra.mxu0 0.0
        %1620 = vmatprep.subr.mxu0 0.0
        %1621 = vmatpush1.msra.mxu0 0.0
        %1622 = vmatprep.subr.mxu0 0.0
        %1623 = vmatpush1.msra.mxu0 0.0
        %1624 = vmatprep.subr.mxu0 0.0
        %1625 = vmatpush1.msra.mxu0 0.0
        %1626 = vmatprep.subr.mxu0 0.0
        %1627 = vmatpush1.msra.mxu0 0.0
        %1628 = vmatprep.subr.mxu0 0.0
        %1629 = vmatpush1.msra.mxu0 0.0
        %1630 = vmatprep.subr.mxu0 0.0
        %1631 = vmatpush1.msra.mxu0 0.0
        %1632 = vmatprep.subr.mxu0 0.0
        %1633 = vmatpush1.msra.mxu0 0.0
        %1634 = vmatprep.subr.mxu0 0.0
        %1635 = vmatpush1.msra.mxu0 0.0
        %1636 = vmatprep.subr.mxu0 0.0
        %1637 = vmatpush1.msra.mxu0 0.0
        %1638 = vmatprep.subr.mxu0 0.0
        %1639 = vmatpush1.msra.mxu0 0.0
        %1640 = vmatprep.subr.mxu0 0.0
        %1641 = vmatpush1.msra.mxu0 0.0
        %1642 = vmatprep.subr.mxu0 0.0
        %1643 = vmatpush1.msra.mxu0 0.0
        %1644 = vmatprep.subr.mxu0 0.0
        %1645 = vmatpush1.msra.mxu0 0.0
        %1646 = vmatprep.subr.mxu0 0.0
        %1647 = vmatpush1.msra.mxu0 0.0
        %1648 = vmatprep.subr.mxu0 0.0
        %1649 = vmatpush1.msra.mxu0 0.0
        %1650 = vmatprep.subr.mxu0 0.0
        %1651 = vmatpush1.msra.mxu0 0.0
        %1652 = vmatprep.subr.mxu0 0.0
        %1653 = vmatpush1.msra.mxu0 0.0
        %1654 = vmatprep.subr.mxu0 0.0
        %1655 = vmatpush1.msra.mxu0 0.0
        %1656 = vmatprep.subr.mxu0 0.0
        %1657 = vmatpush1.msra.mxu0 0.0
        %1658 = vmatprep.subr.mxu0 0.0
        %1659 = vmatpush1.msra.mxu0 0.0
        %1660 = vmatprep.subr.mxu0 0.0
        %1661 = vmatpush1.msra.mxu0 0.0
        %1662 = vmatprep.subr.mxu0 0.0
        %1663 = vmatpush1.msra.mxu0 0.0
        %1664 = vmatprep.subr.mxu0 0.0
        %1665 = vmatpush1.msra.mxu0 0.0
        %1666 = vmatprep.subr.mxu0 0.0
        %1667 = vmatpush1.msra.mxu0 0.0
        %1668 = vmatprep.subr.mxu0 0.0
        %1669 = vmatpush1.msra.mxu0 0.0
        %1670 = vmatprep.subr.mxu0 0.0
        %1671 = vmatpush1.msra.mxu0 0.0
        %1672 = vmatprep.subr.mxu0 0.0
        %1673 = vmatpush1.msra.mxu0 0.0
        %1674 = vmatprep.subr.mxu0 0.0
        %1675 = vmatpush1.msra.mxu0 0.0
        %1676 = vmatprep.subr.mxu0 0.0
        %1677 = vmatpush1.msra.mxu0 0.0
        %1678 = vmatprep.mubr.f32.mxu0 0.0
        %1679 = vmatmul.mubr.f32.gmra.mrb[0].mxu0 %v1612
        %v1680 = vpop.f32.mrb[0].mxu0
        %v1681 = vadd.f32 0.0, %v1680
        %v1682 = vpop.f32.mrb[0].mxu0
        %1683 = vdwg.mxu0
        %1685 = vrot.lane.b32.xlu0 %v1225, 4
        %v1686 = vpop.permute.xlu0 %1685
        %1689 = vrot.lane.b32.xlu0 %v1301, 8
        %v1690 = vpop.permute.xlu0 %1689
        %1693 = vrot.lane.b32.xlu0 %v1377, 12
        %v1694 = vpop.permute.xlu0 %1693
        %1697 = vrot.lane.b32.xlu0 %v1453, 16
        %v1698 = vpop.permute.xlu0 %1697
        %1701 = vrot.lane.b32.xlu0 %v1529, 20
        %v1702 = vpop.permute.xlu0 %1701
        %1705 = vrot.lane.b32.xlu0 %v1605, 24
        %v1706 = vpop.permute.xlu0 %1705
        %1709 = vrot.lane.b32.xlu0 %v1681, 28
        %v1710 = vpop.permute.xlu0 %1709
        %v1712 = vsel %vm372, %v1149, %v1686
        %v1713 = vsel %vm987, %v1712, %v1690
        %vm1714 = vcmask 97280
        %v1715 = vsel %vm1714, %v1713, %v1694
        %vm1716 = vcmask 130048
        %v1717 = vsel %vm1716, %v1715, %v1698
        %vm1718 = vcmask 162816
        %v1719 = vsel %vm1718, %v1717, %v1702
        %vm1720 = vcmask 195584
        %v1721 = vsel %vm1720, %v1719, %v1706
        %vm1722 = vcmask 228352
        %v1723 = vsel %vm1722, %v1721, %v1710
        %v1724 = vld [vmem:[%s3] sm:$0xff]
        %v1725 = vld [vmem:[%s3 + $0x8] sm:$0xff]
        %v1726 = vld [vmem:[%s3 + $0x10] sm:$0xff]
        %v1727 = vld [vmem:[%s3 + $0x18] sm:$0xff]
        %v1728 = vlaneseq
        %v1729 = vshrl.u32 %v1728, 7
        %v1730 = vsub.s32 3, %v1729
        %v1731 = vrot.slane %v248, %v1730
        %v1733 = vsel %vm249, %v1723, 0
        %1735 = vmatprep.subr.mxu0 0.0
        %1736 = vmatpush1.msra.mxu0 %v1724
        %1737 = vmatprep.subr.mxu0 0.0
        %1738 = vmatpush1.msra.mxu0 %v1725
        %1739 = vmatprep.subr.mxu0 0.0
        %1740 = vmatpush1.msra.mxu0 %v1726
        %1741 = vmatprep.subr.mxu0 0.0
        %1742 = vmatpush1.msra.mxu0 %v1727
        %1743 = vmatprep.subr.mxu0 0.0
        %1744 = vmatpush1.msra.mxu0 0.0
        %1745 = vmatprep.subr.mxu0 0.0
        %1746 = vmatpush1.msra.mxu0 0.0
        %1747 = vmatprep.subr.mxu0 0.0
        %1748 = vmatpush1.msra.mxu0 0.0
        %1749 = vmatprep.subr.mxu0 0.0
        %1750 = vmatpush1.msra.mxu0 0.0
        %1751 = vmatprep.subr.mxu0 0.0
        %1752 = vmatpush1.msra.mxu0 0.0
        %1753 = vmatprep.subr.mxu0 0.0
        %1754 = vmatpush1.msra.mxu0 0.0
        %1755 = vmatprep.subr.mxu0 0.0
        %1756 = vmatpush1.msra.mxu0 0.0
        %1757 = vmatprep.subr.mxu0 0.0
        %1758 = vmatpush1.msra.mxu0 0.0
        %1759 = vmatprep.subr.mxu0 0.0
        %1760 = vmatpush1.msra.mxu0 0.0
        %1761 = vmatprep.subr.mxu0 0.0
        %1762 = vmatpush1.msra.mxu0 0.0
        %1763 = vmatprep.subr.mxu0 0.0
        %1764 = vmatpush1.msra.mxu0 0.0
        %1765 = vmatprep.subr.mxu0 0.0
        %1766 = vmatpush1.msra.mxu0 0.0
        %1767 = vmatprep.subr.mxu0 0.0
        %1768 = vmatpush1.msra.mxu0 0.0
        %1769 = vmatprep.subr.mxu0 0.0
        %1770 = vmatpush1.msra.mxu0 0.0
        %1771 = vmatprep.subr.mxu0 0.0
        %1772 = vmatpush1.msra.mxu0 0.0
        %1773 = vmatprep.subr.mxu0 0.0
        %1774 = vmatpush1.msra.mxu0 0.0
        %1775 = vmatprep.subr.mxu0 0.0
        %1776 = vmatpush1.msra.mxu0 0.0
        %1777 = vmatprep.subr.mxu0 0.0
        %1778 = vmatpush1.msra.mxu0 0.0
        %1779 = vmatprep.subr.mxu0 0.0
        %1780 = vmatpush1.msra.mxu0 0.0
        %1781 = vmatprep.subr.mxu0 0.0
        %1782 = vmatpush1.msra.mxu0 0.0
        %1783 = vmatprep.subr.mxu0 0.0
        %1784 = vmatpush1.msra.mxu0 0.0
        %1785 = vmatprep.subr.mxu0 0.0
        %1786 = vmatpush1.msra.mxu0 0.0
        %1787 = vmatprep.subr.mxu0 0.0
        %1788 = vmatpush1.msra.mxu0 0.0
        %1789 = vmatprep.subr.mxu0 0.0
        %1790 = vmatpush1.msra.mxu0 0.0
        %1791 = vmatprep.subr.mxu0 0.0
        %1792 = vmatpush1.msra.mxu0 0.0
        %1793 = vmatprep.subr.mxu0 0.0
        %1794 = vmatpush1.msra.mxu0 0.0
        %1795 = vmatprep.subr.mxu0 0.0
        %1796 = vmatpush1.msra.mxu0 0.0
        %1797 = vmatprep.subr.mxu0 0.0
        %1798 = vmatpush1.msra.mxu0 0.0
        %1799 = vmatprep.mubr.f32.mxu0 0.0
        %1800 = vmatmul.mubr.f32.gmra.mrb[0].mxu0 %v1733
        %v1801 = vpop.f32.mrb[0].mxu0
        %v1802 = vadd.f32 %v1731, %v1801
        %v1803 = vpop.f32.mrb[0].mxu0
        %1804 = vdwg.mxu0
        %v1805 = vadd.f32 %v247, %v1802
        %v1806 = vsel %vm249, %v1805, 0.0
        %1807 = vadd.xlane.f32.xlu0 %v1806
        %v1808 = vpop.xlane.xlu0 %1807
        %v1809 = vmul.f32 %v1808, %v253
        %v1810 = vsub.f32 %v1805, %v1809
        %v1811 = vmul.f32 %v1810, %v1810
        %v1812 = vsel %vm249, %v1811, 0.0
        %1813 = vadd.xlane.f32.xlu0 %v1812
        %v1814 = vpop.xlane.xlu0 %1813
        %v1815 = vmul.f32 %v1814, %v253
        %v1816 = vadd.f32 %v1815, 1e-05
        %v1817 = vrsqrt.pop %v1816
        %v1818 = vmul.f32 %v1810, %v1817
        %v1819 = vlaneseq
        %v1820 = vshrl.u32 %v1819, 7
        %v1821 = vsub.s32 4, %v1820
        %v1822 = vrot.slane %v248, %v1821
        %v1823 = vmul.f32 %v1818, %v1822
        %v1824 = vlaneseq
        %v1825 = vshrl.u32 %v1824, 7
        %v1826 = vsub.s32 5, %v1825
        %v1827 = vrot.slane %v248, %v1826
        %v1828 = vadd.f32 %v1823, %v1827
        %v1829 = vld [vmem:[%s4] sm:$0xff]
        %v1830 = vld [vmem:[%s4 + $0x8] sm:$0xff]
        %v1831 = vld [vmem:[%s4 + $0x10] sm:$0xff]
        %v1832 = vld [vmem:[%s4 + $0x18] sm:$0xff]
        %v1833 = vlaneseq
        %v1834 = vshrl.u32 %v1833, 7
        %v1835 = vsub.s32 6, %v1834
        %v1836 = vrot.slane %v248, %v1835
        %v1838 = vsel %vm249, %v1828, 0
        %1840 = vmatprep.subr.mxu0 0.0
        %1841 = vmatpush1.msra.mxu0 %v1829
        %1842 = vmatprep.subr.mxu0 0.0
        %1843 = vmatpush1.msra.mxu0 %v1830
        %1844 = vmatprep.subr.mxu0 0.0
        %1845 = vmatpush1.msra.mxu0 %v1831
        %1846 = vmatprep.subr.mxu0 0.0
        %1847 = vmatpush1.msra.mxu0 %v1832
        %1848 = vmatprep.subr.mxu0 0.0
        %1849 = vmatpush1.msra.mxu0 0.0
        %1850 = vmatprep.subr.mxu0 0.0
        %1851 = vmatpush1.msra.mxu0 0.0
        %1852 = vmatprep.subr.mxu0 0.0
        %1853 = vmatpush1.msra.mxu0 0.0
        %1854 = vmatprep.subr.mxu0 0.0
        %1855 = vmatpush1.msra.mxu0 0.0
        %1856 = vmatprep.subr.mxu0 0.0
        %1857 = vmatpush1.msra.mxu0 0.0
        %1858 = vmatprep.subr.mxu0 0.0
        %1859 = vmatpush1.msra.mxu0 0.0
        %1860 = vmatprep.subr.mxu0 0.0
        %1861 = vmatpush1.msra.mxu0 0.0
        %1862 = vmatprep.subr.mxu0 0.0
        %1863 = vmatpush1.msra.mxu0 0.0
        %1864 = vmatprep.subr.mxu0 0.0
        %1865 = vmatpush1.msra.mxu0 0.0
        %1866 = vmatprep.subr.mxu0 0.0
        %1867 = vmatpush1.msra.mxu0 0.0
        %1868 = vmatprep.subr.mxu0 0.0
        %1869 = vmatpush1.msra.mxu0 0.0
        %1870 = vmatprep.subr.mxu0 0.0
        %1871 = vmatpush1.msra.mxu0 0.0
        %1872 = vmatprep.subr.mxu0 0.0
        %1873 = vmatpush1.msra.mxu0 0.0
        %1874 = vmatprep.subr.mxu0 0.0
        %1875 = vmatpush1.msra.mxu0 0.0
        %1876 = vmatprep.subr.mxu0 0.0
        %1877 = vmatpush1.msra.mxu0 0.0
        %1878 = vmatprep.subr.mxu0 0.0
        %1879 = vmatpush1.msra.mxu0 0.0
        %1880 = vmatprep.subr.mxu0 0.0
        %1881 = vmatpush1.msra.mxu0 0.0
        %1882 = vmatprep.subr.mxu0 0.0
        %1883 = vmatpush1.msra.mxu0 0.0
        %1884 = vmatprep.subr.mxu0 0.0
        %1885 = vmatpush1.msra.mxu0 0.0
        %1886 = vmatprep.subr.mxu0 0.0
        %1887 = vmatpush1.msra.mxu0 0.0
        %1888 = vmatprep.subr.mxu0 0.0
        %1889 = vmatpush1.msra.mxu0 0.0
        %1890 = vmatprep.subr.mxu0 0.0
        %1891 = vmatpush1.msra.mxu0 0.0
        %1892 = vmatprep.subr.mxu0 0.0
        %1893 = vmatpush1.msra.mxu0 0.0
        %1894 = vmatprep.subr.mxu0 0.0
        %1895 = vmatpush1.msra.mxu0 0.0
        %1896 = vmatprep.subr.mxu0 0.0
        %1897 = vmatpush1.msra.mxu0 0.0
        %1898 = vmatprep.subr.mxu0 0.0
        %1899 = vmatpush1.msra.mxu0 0.0
        %1900 = vmatprep.subr.mxu0 0.0
        %1901 = vmatpush1.msra.mxu0 0.0
        %1902 = vmatprep.subr.mxu0 0.0
        %1903 = vmatpush1.msra.mxu0 0.0
        %1904 = vmatprep.mubr.f32.mxu0 0.0
        %1905 = vmatmul.mubr.f32.gmra.mrb[0].mxu0 %v1838
        %v1906 = vpop.f32.mrb[0].mxu0
        %v1907 = vadd.f32 %v1836, %v1906
        %v1908 = vpop.f32.mrb[0].mxu0
        %1909 = vdwg.mxu0
        %v1910 = vmul.f32 %v1907, 0.5
        %v1911 = vmul.f32 %v1907, 0.70710677
        %v1912 = verf.f32.pop %v1911
        %v1913 = vadd.f32 %v1912, 1.0
        %v1914 = vmul.f32 %v1910, %v1913
        %v1915 = vld [vmem:[%s5] sm:$0xff]
        %v1916 = vld [vmem:[%s5 + $0x8] sm:$0xff]
        %v1917 = vld [vmem:[%s5 + $0x10] sm:$0xff]
        %v1918 = vld [vmem:[%s5 + $0x18] sm:$0xff]
        %v1919 = vld [vmem:[%s5 + $0x20] sm:$0xff]
        %v1920 = vld [vmem:[%s5 + $0x28] sm:$0xff]
        %v1921 = vld [vmem:[%s5 + $0x30] sm:$0xff]
        %v1922 = vld [vmem:[%s5 + $0x38] sm:$0xff]
        %v1923 = vld [vmem:[%s5 + $0x40] sm:$0xff]
        %v1924 = vld [vmem:[%s5 + $0x48] sm:$0xff]
        %v1925 = vld [vmem:[%s5 + $0x50] sm:$0xff]
        %v1926 = vld [vmem:[%s5 + $0x58] sm:$0xff]
        %v1927 = vld [vmem:[%s5 + $0x60] sm:$0xff]
        %v1928 = vld [vmem:[%s5 + $0x68] sm:$0xff]
        %v1929 = vld [vmem:[%s5 + $0x70] sm:$0xff]
        %v1930 = vld [vmem:[%s5 + $0x78] sm:$0xff]
        %v1931 = vlaneseq
        %v1932 = vshrl.u32 %v1931, 7
        %v1933 = vsub.s32 7, %v1932
        %v1934 = vrot.slane %v248, %v1933
        %1935 = vmatprep.subr.mxu0 0.0
        %1936 = vmatpush1.msra.mxu0 %v1915
        %1937 = vmatprep.subr.mxu0 0.0
        %1938 = vmatpush1.msra.mxu0 %v1916
        %1939 = vmatprep.subr.mxu0 0.0
        %1940 = vmatpush1.msra.mxu0 %v1917
        %1941 = vmatprep.subr.mxu0 0.0
        %1942 = vmatpush1.msra.mxu0 %v1918
        %1943 = vmatprep.subr.mxu0 0.0
        %1944 = vmatpush1.msra.mxu0 %v1919
        %1945 = vmatprep.subr.mxu0 0.0
        %1946 = vmatpush1.msra.mxu0 %v1920
        %1947 = vmatprep.subr.mxu0 0.0
        %1948 = vmatpush1.msra.mxu0 %v1921
        %1949 = vmatprep.subr.mxu0 0.0
        %1950 = vmatpush1.msra.mxu0 %v1922
        %1951 = vmatprep.subr.mxu0 0.0
        %1952 = vmatpush1.msra.mxu0 %v1923
        %1953 = vmatprep.subr.mxu0 0.0
        %1954 = vmatpush1.msra.mxu0 %v1924
        %1955 = vmatprep.subr.mxu0 0.0
        %1956 = vmatpush1.msra.mxu0 %v1925
        %1957 = vmatprep.subr.mxu0 0.0
        %1958 = vmatpush1.msra.mxu0 %v1926
        %1959 = vmatprep.subr.mxu0 0.0
        %1960 = vmatpush1.msra.mxu0 %v1927
        %1961 = vmatprep.subr.mxu0 0.0
        %1962 = vmatpush1.msra.mxu0 %v1928
        %1963 = vmatprep.subr.mxu0 0.0
        %1964 = vmatpush1.msra.mxu0 %v1929
        %1965 = vmatprep.subr.mxu0 0.0
        %1966 = vmatpush1.msra.mxu0 %v1930
        %1967 = vmatprep.subr.mxu0 0.0
        %1968 = vmatpush1.msra.mxu0 0.0
        %1969 = vmatprep.subr.mxu0 0.0
        %1970 = vmatpush1.msra.mxu0 0.0
        %1971 = vmatprep.subr.mxu0 0.0
        %1972 = vmatpush1.msra.mxu0 0.0
        %1973 = vmatprep.subr.mxu0 0.0
        %1974 = vmatpush1.msra.mxu0 0.0
        %1975 = vmatprep.subr.mxu0 0.0
        %1976 = vmatpush1.msra.mxu0 0.0
        %1977 = vmatprep.subr.mxu0 0.0
        %1978 = vmatpush1.msra.mxu0 0.0
        %1979 = vmatprep.subr.mxu0 0.0
        %1980 = vmatpush1.msra.mxu0 0.0
        %1981 = vmatprep.subr.mxu0 0.0
        %1982 = vmatpush1.msra.mxu0 0.0
        %1983 = vmatprep.subr.mxu0 0.0
        %1984 = vmatpush1.msra.mxu0 0.0
        %1985 = vmatprep.subr.mxu0 0.0
        %1986 = vmatpush1.msra.mxu0 0.0
        %1987 = vmatprep.subr.mxu0 0.0
        %1988 = vmatpush1.msra.mxu0 0.0
        %1989 = vmatprep.subr.mxu0 0.0
        %1990 = vmatpush1.msra.mxu0 0.0
        %1991 = vmatprep.subr.mxu0 0.0
        %1992 = vmatpush1.msra.mxu0 0.0
        %1993 = vmatprep.subr.mxu0 0.0
        %1994 = vmatpush1.msra.mxu0 0.0
        %1995 = vmatprep.subr.mxu0 0.0
        %1996 = vmatpush1.msra.mxu0 0.0
        %1997 = vmatprep.subr.mxu0 0.0
        %1998 = vmatpush1.msra.mxu0 0.0
        %1999 = vmatprep.mubr.f32.mxu0 0.0
        %2000 = vmatmul.mubr.f32.gmra.mrb[0].mxu0 %v1914
        %v2001 = vpop.f32.mrb[0].mxu0
        %v2002 = vadd.f32 %v1934, %v2001
        %v2003 = vpop.f32.mrb[0].mxu0
        %2004 = vdwg.mxu0
        %v2005 = vadd.f32 %v1805, %v2002
        %2006 = vst.msk [vmem:[%s242] sm:$0xff] %vm249, %v2005
        %s2007 = sand.u32 %s159, 1
        %s2008 = scalar_lea.sflag [#allocation3], %s2007
        %s2009 = sand.u32 %s159, 1
        %s2010 = smul.addr %s2009, 8
        %s2011 = scalar_lea.vmem [#allocation2], %s2010
        // Predicated region
        $region45: #{tpu_custom_call.1} parent=43 // pred_check
          %p2012 = pneg %p169
        $region46: #{tpu_custom_call.1} parent=43 // pred_check_branch
          %2014 = sbr.rel (%p2012) target = $region48
        $region47: #{tpu_custom_call.1} parent=43 // pred_region
          %s2016 = ssub.s32 128, 128
          %2017 = vsyncadd %s2008, %s2016
          %s2018 = smul.addr %s20, 128
          %s2019 = scalar_lea.hbm %s6, %s2018
          %s2021 = sshll.u32 %s2011, 4
          %s2022 = int_to_ptr.vmem [resolvable:$true] %s2021
          %2024 = dma.vmem_to_hbm [thread:$0]  %s2022, 128, %s2019, %s2008
        $region48: #{tpu_custom_call.1} parent=43 // pred_fallthru
          _
      $region44: #{tpu_custom_call.1} parent=5 // pred_fallthru
        _
      %p2025 = scmp.le.s32.totalorder 2, %s15
      // Predicated region
      $region49: #{tpu_custom_call.1} parent=5 // pred_check
        %p2026 = pneg %p2025
      $region50: #{tpu_custom_call.1} parent=5 // pred_check_branch
        %2028 = sbr.rel (%p2026) target = $region52
      $region51: #{tpu_custom_call.1} parent=5 // pred_region
        %s2029 = ssub.s32 %s15, 2
        // Predicated region
        $region53: #{tpu_custom_call.1} parent=51 // pred_check
          %p2030 = pneg %p175
        $region54: #{tpu_custom_call.1} parent=51 // pred_check_branch
          %2032 = sbr.rel (%p2030) target = $region56
        $region55: #{tpu_custom_call.1} parent=51 // pred_region
          %s2033 = sand.u32 %s160, 1
          %s2034 = scalar_lea.sflag [#allocation3], %s2033
          %s2035 = sand.u32 %s160, 1
          %s2036 = smul.addr %s2035, 8
          %s2037 = scalar_lea.vmem [#allocation2], %s2036
          %2038 = dma.done %s2034, 128
        $region56: #{tpu_custom_call.1} parent=51 // pred_fallthru
          _
      $region52: #{tpu_custom_call.1} parent=5 // pred_fallthru
        _
    $region6: #{tpu_custom_call.1} parent=1 // loop_footer
      %s19 = sadd.s32 1, %s15
    $region7: #{tpu_custom_call.1} parent=1 // loop_footer_branch
      %14 = sbr.rel target = $region3
    $region8: #{tpu_custom_call.1} parent=1 // loop_exit
      _
    %2039 = vsyncpa [#allocation3], 1
    %s2040 = scalar_lea.sflag [#allocation3], 1
    %2041 = vsyncpa %s2040, 1

</llo_original>
